<compile_context>
chip_gen: v7x
topology: tpu7x:2x2x1
jax: 0.10.0
libtpu: 0.0.40
codegen_flags: <defaults>
</compile_context>

<pallas_src>
import functools

import jax
import jax.numpy as jnp
from jax.experimental import pallas as pl
from jax.experimental.pallas import tpu as pltpu


def _linear_attention_kernel(x_ref, wqkv_ref, wout_ref, bout_ref, g_ref, o_ref,
                             *, heads, dim_head, scale, inv_n, eps):
    # x_ref: (1, C, N) block for one batch element, N = H*W on lanes.
    x = x_ref[0].astype(jnp.float32)                       # (C, N)
    hidden = heads * dim_head

    # ---- to_qkv: 1x1 conv == channel matmul ----
    qkv = jnp.dot(wqkv_ref[...].astype(jnp.float32), x,
                  preferred_element_type=jnp.float32)      # (3*hidden, N)

    outs = []
    for h in range(heads):                                  # static unroll (heads=4)
        lo = h * dim_head
        q = qkv[lo:lo + dim_head, :]                         # (d, N)
        k = qkv[hidden + lo:hidden + lo + dim_head, :]       # (d, N)
        v = qkv[2 * hidden + lo:2 * hidden + lo + dim_head, :]

        # q: softmax over head-dim (sublane axis), then * scale
        q = jnp.exp(q - jnp.max(q, axis=0, keepdims=True))
        q = q * (scale / jnp.sum(q, axis=0, keepdims=True))

        # k: softmax over spatial (lane axis)
        k = jnp.exp(k - jnp.max(k, axis=1, keepdims=True))
        k = k / jnp.sum(k, axis=1, keepdims=True)

        v = v * inv_n

        # context_t[e, d] = sum_n v[e, n] * k[d, n]   (NT matmul, contraction = N)
        context_t = jax.lax.dot_general(
            v, k, (((1,), (1,)), ((), ())),
            preferred_element_type=jnp.float32)              # (e, d)

        # out_h[e, n] = sum_d context_t[e, d] * q[d, n]
        out_h = jnp.dot(context_t, q,
                        preferred_element_type=jnp.float32)  # (e, N)
        outs.append(out_h)

    out_all = jnp.concatenate(outs, axis=0)                  # (hidden, N)

    # ---- to_out: 1x1 conv (with bias) + channel LayerNorm * g ----
    y = jnp.dot(wout_ref[...].astype(jnp.float32), out_all,
                preferred_element_type=jnp.float32)          # (dim, N)
    y = y + bout_ref[...]

    mean = jnp.mean(y, axis=0, keepdims=True)                # (1, N)
    var = jnp.mean(jnp.square(y - mean), axis=0, keepdims=True)
    y = (y - mean) * jax.lax.rsqrt(var + eps) * g_ref[...]

    o_ref[0] = y.astype(o_ref.dtype)


def linear_attention(x, w_qkv, w_out, b_out, g, *, heads, dim_head):
    """x: (B, C, H, W) NCHW (PyTorch layout); 1x1-conv weights as (out_ch, in_ch)."""
    b, c, hh, ww = x.shape
    n = hh * ww
    hidden = heads * dim_head
    dim = w_out.shape[0]
    assert w_qkv.shape == (3 * hidden, c)
    assert w_out.shape == (dim, hidden)

    x_flat = x.reshape(b, c, n)                 # pure reshape: spatial -> lanes
    b_out2 = b_out.reshape(dim, 1)
    g2 = g.reshape(dim, 1)
    eps = 1e-5 if x.dtype == jnp.float32 else 1e-3

    kernel = functools.partial(
        _linear_attention_kernel,
        heads=heads, dim_head=dim_head,
        scale=float(dim_head) ** -0.5, inv_n=1.0 / float(n), eps=eps)

    out = pl.pallas_call(
        kernel,
        out_shape=jax.ShapeDtypeStruct((b, dim, n), x.dtype),
        grid_spec=pltpu.PrefetchScalarGridSpec(
            num_scalar_prefetch=0,
            grid=(b,),
            in_specs=[
                pl.BlockSpec((1, c, n), lambda i: (i, 0, 0)),
                pl.BlockSpec((3 * hidden, c), lambda i: (0, 0)),
                pl.BlockSpec((dim, hidden), lambda i: (0, 0)),
                pl.BlockSpec((dim, 1), lambda i: (0, 0)),
                pl.BlockSpec((dim, 1), lambda i: (0, 0)),
            ],
            out_specs=pl.BlockSpec((1, dim, n), lambda i: (i, 0, 0)),
        ),
        compiler_params=pltpu.CompilerParams(
            dimension_semantics=("parallel",),
            # Explicit scoped-VMEM budget: above v5e's 16 MiB default, well
            # under v7x's 64 MiB physical.
            vmem_limit_bytes=32 * 1024 * 1024,
        ),
    )(x_flat, w_qkv, w_out, b_out2, g2)

    return out.reshape(b, dim, hh, ww)


def reference(x, w_qkv, w_out, b_out, g, *, heads, dim_head):
    # pure-JAX reference mirroring the PyTorch forward (NCHW).
    b, c, hh, ww = x.shape
    n = hh * ww
    hidden = heads * dim_head
    scale = float(dim_head) ** -0.5
    hi = jax.lax.Precision.HIGHEST

    xf = x.reshape(b, c, n)
    qkv = jnp.einsum('oc,bcn->bon', w_qkv, xf, precision=hi)     # (b, 3*hidden, n)
    q, k, v = jnp.split(qkv, 3, axis=1)
    q = q.reshape(b, heads, dim_head, n)
    k = k.reshape(b, heads, dim_head, n)
    v = v.reshape(b, heads, dim_head, n)

    q = jax.nn.softmax(q, axis=-2) * scale
    k = jax.nn.softmax(k, axis=-1)
    v = v / n

    context = jnp.einsum('bhdn,bhen->bhde', k, v, precision=hi)
    out = jnp.einsum('bhde,bhdn->bhen', context, q, precision=hi)
    out = out.reshape(b, hidden, n)

    y = jnp.einsum('oh,bhn->bon', w_out, out, precision=hi) + b_out.reshape(1, -1, 1)
    eps = 1e-5 if x.dtype == jnp.float32 else 1e-3
    mean = y.mean(axis=1, keepdims=True)
    var = jnp.mean(jnp.square(y - mean), axis=1, keepdims=True)
    y = (y - mean) * jax.lax.rsqrt(var + eps) * g.reshape(1, -1, 1)
    return y.reshape(b, -1, hh, ww)


if __name__ == "__main__":
    # Small shapes consistent with the module: dim=4, heads=4, dim_head=32.
    B, DIM, H, W = 2, 4, 16, 16
    HEADS, DIM_HEAD = 4, 32
    HIDDEN = HEADS * DIM_HEAD

    key = jax.random.PRNGKey(0)
    kx, kqkv, kwo, kbo = jax.random.split(key, 4)

    x = jax.random.normal(kx, (B, DIM, H, W), dtype=jnp.float32)
    # 1x1 conv weights stored as (out_ch, in_ch), i.e. PyTorch (O, I, 1, 1) squeezed.
    w_qkv = 0.1 * jax.random.normal(kqkv, (3 * HIDDEN, DIM), dtype=jnp.float32)
    w_out = 0.1 * jax.random.normal(kwo, (DIM, HIDDEN), dtype=jnp.float32)
    b_out = 0.1 * jax.random.normal(kbo, (DIM,), dtype=jnp.float32)
    g = jnp.ones((DIM,), dtype=jnp.float32)   # LayerNorm gain, PyTorch init = ones

    out = linear_attention(x, w_qkv, w_out, b_out, g, heads=HEADS, dim_head=DIM_HEAD)
    out = jax.block_until_ready(out)

    ref = reference(x, w_qkv, w_out, b_out, g, heads=HEADS, dim_head=DIM_HEAD)
    max_err = float(jnp.max(jnp.abs(out - ref)))
    assert max_err < 1e-3, f"mismatch vs reference: {max_err}"

    print("KERNEL_OK")
</pallas_src>

<mosaic_0001>
module attributes {stable_mosaic.version = 11 : i64} {
  func.func @_linear_attention_kernel(%arg0: i32, %arg1: memref<1x4x256xf32, #tpu.memory_space<vmem>>, %arg2: memref<384x4xf32, #tpu.memory_space<vmem>>, %arg3: memref<4x128xf32, #tpu.memory_space<vmem>>, %arg4: memref<4x1xf32, #tpu.memory_space<vmem>>, %arg5: memref<4x1xf32, #tpu.memory_space<vmem>>, %arg6: memref<1x4x256xf32, #tpu.memory_space<vmem>>) attributes {dimension_semantics = [#tpu.dimension_semantics<parallel>], iteration_bounds = array<i64: 2>, scalar_prefetch = 0 : i64, scratch_operands = 0 : i64, tpu.core_type = #tpu.core_type<tc>, window_params = [{transform_indices = @transform_0, window_bounds = array<i64: 1, 4, 256>}, {pipeline_mode = #tpu.pipeline_mode<synchronous>, transform_indices = @transform_1, window_bounds = array<i64: 384, 4>}, {pipeline_mode = #tpu.pipeline_mode<synchronous>, transform_indices = @transform_2, window_bounds = array<i64: 4, 128>}, {pipeline_mode = #tpu.pipeline_mode<synchronous>, transform_indices = @transform_3, window_bounds = array<i64: 4, 1>}, {pipeline_mode = #tpu.pipeline_mode<synchronous>, transform_indices = @transform_4, window_bounds = array<i64: 4, 1>}, {transform_indices = @transform_5, window_bounds = array<i64: 1, 4, 256>}]} {
    %c0 = arith.constant 0 : index
    %c0_0 = arith.constant 0 : index
    %c0_1 = arith.constant 0 : index
    %0 = vector.load %arg1[%c0, %c0_0, %c0_1] : memref<1x4x256xf32, #tpu.memory_space<vmem>>, vector<1x4x256xf32>
    %1 = vector.shape_cast %0 : vector<1x4x256xf32> to vector<4x256xf32>
    %c0_2 = arith.constant 0 : index
    %c0_3 = arith.constant 0 : index
    %2 = vector.load %arg2[%c0_2, %c0_3] : memref<384x4xf32, #tpu.memory_space<vmem>>, vector<384x4xf32>
    %cst = arith.constant dense<0.000000e+00> : vector<384x256xf32>
    %3 = tpu.matmul %2, %1, %cst {dimension_numbers = #tpu.dot_dimension_numbers<[1], [0], [0], [1], [0, 0, 1, 1], [], []>} : vector<384x4xf32>, vector<4x256xf32>, vector<384x256xf32> -> vector<384x256xf32>
    %4 = vector.extract_strided_slice %3 {offsets = [0, 0], sizes = [32, 256], strides = [1, 1]} : vector<384x256xf32> to vector<32x256xf32>
    %5 = vector.extract_strided_slice %3 {offsets = [128, 0], sizes = [32, 256], strides = [1, 1]} : vector<384x256xf32> to vector<32x256xf32>
    %6 = vector.extract_strided_slice %3 {offsets = [256, 0], sizes = [32, 256], strides = [1, 1]} : vector<384x256xf32> to vector<32x256xf32>
    %cst_4 = arith.constant dense<0xFF800000> : vector<256xf32>
    %7 = vector.multi_reduction <maximumf>, %4, %cst_4 [0] : vector<32x256xf32> to vector<256xf32>
    %8 = vector.shape_cast %7 : vector<256xf32> to vector<1x256xf32>
    %9 = vector.broadcast %8 : vector<1x256xf32> to vector<32x256xf32>
    %10 = arith.subf %4, %9 : vector<32x256xf32>
    %11 = math.exp %10 : vector<32x256xf32>
    %cst_5 = arith.constant dense<0.000000e+00> : vector<256xf32>
    %12 = vector.multi_reduction <add>, %11, %cst_5 [0] : vector<32x256xf32> to vector<256xf32>
    %13 = vector.shape_cast %12 : vector<256xf32> to vector<1x256xf32>
    %cst_6 = arith.constant 0.176776692 : f32
    %14 = vector.broadcast %cst_6 : f32 to vector<1x256xf32>
    %15 = arith.divf %14, %13 : vector<1x256xf32>
    %16 = vector.broadcast %15 : vector<1x256xf32> to vector<32x256xf32>
    %17 = arith.mulf %11, %16 : vector<32x256xf32>
    %cst_7 = arith.constant dense<0xFF800000> : vector<32xf32>
    %18 = vector.multi_reduction <maximumf>, %5, %cst_7 [1] : vector<32x256xf32> to vector<32xf32>
    %19 = vector.shape_cast %18 : vector<32xf32> to vector<32x1xf32>
    %20 = vector.broadcast %19 : vector<32x1xf32> to vector<32x256xf32>
    %21 = arith.subf %5, %20 : vector<32x256xf32>
    %22 = math.exp %21 : vector<32x256xf32>
    %cst_8 = arith.constant dense<0.000000e+00> : vector<32xf32>
    %23 = vector.multi_reduction <add>, %22, %cst_8 [1] : vector<32x256xf32> to vector<32xf32>
    %24 = vector.shape_cast %23 : vector<32xf32> to vector<32x1xf32>
    %25 = vector.broadcast %24 : vector<32x1xf32> to vector<32x256xf32>
    %26 = arith.divf %22, %25 : vector<32x256xf32>
    %cst_9 = arith.constant 3.906250e-03 : f32
    %27 = vector.broadcast %cst_9 : f32 to vector<32x256xf32>
    %28 = arith.mulf %6, %27 : vector<32x256xf32>
    %cst_10 = arith.constant dense<0.000000e+00> : vector<32x32xf32>
    %29 = tpu.matmul %28, %26, %cst_10 {dimension_numbers = #tpu.dot_dimension_numbers<[1], [1], [0], [0], [0, 0, 1, 0], [], []>} : vector<32x256xf32>, vector<32x256xf32>, vector<32x32xf32> -> vector<32x32xf32>
    %cst_11 = arith.constant dense<0.000000e+00> : vector<32x256xf32>
    %30 = tpu.matmul %29, %17, %cst_11 {dimension_numbers = #tpu.dot_dimension_numbers<[1], [0], [0], [1], [0, 0, 1, 1], [], []>} : vector<32x32xf32>, vector<32x256xf32>, vector<32x256xf32> -> vector<32x256xf32>
    %31 = vector.extract_strided_slice %3 {offsets = [32, 0], sizes = [32, 256], strides = [1, 1]} : vector<384x256xf32> to vector<32x256xf32>
    %32 = vector.extract_strided_slice %3 {offsets = [160, 0], sizes = [32, 256], strides = [1, 1]} : vector<384x256xf32> to vector<32x256xf32>
    %33 = vector.extract_strided_slice %3 {offsets = [288, 0], sizes = [32, 256], strides = [1, 1]} : vector<384x256xf32> to vector<32x256xf32>
    %cst_12 = arith.constant dense<0xFF800000> : vector<256xf32>
    %34 = vector.multi_reduction <maximumf>, %31, %cst_12 [0] : vector<32x256xf32> to vector<256xf32>
    %35 = vector.shape_cast %34 : vector<256xf32> to vector<1x256xf32>
    %36 = vector.broadcast %35 : vector<1x256xf32> to vector<32x256xf32>
    %37 = arith.subf %31, %36 : vector<32x256xf32>
    %38 = math.exp %37 : vector<32x256xf32>
    %cst_13 = arith.constant dense<0.000000e+00> : vector<256xf32>
    %39 = vector.multi_reduction <add>, %38, %cst_13 [0] : vector<32x256xf32> to vector<256xf32>
    %40 = vector.shape_cast %39 : vector<256xf32> to vector<1x256xf32>
    %cst_14 = arith.constant 0.176776692 : f32
    %41 = vector.broadcast %cst_14 : f32 to vector<1x256xf32>
    %42 = arith.divf %41, %40 : vector<1x256xf32>
    %43 = vector.broadcast %42 : vector<1x256xf32> to vector<32x256xf32>
    %44 = arith.mulf %38, %43 : vector<32x256xf32>
    %cst_15 = arith.constant dense<0xFF800000> : vector<32xf32>
    %45 = vector.multi_reduction <maximumf>, %32, %cst_15 [1] : vector<32x256xf32> to vector<32xf32>
    %46 = vector.shape_cast %45 : vector<32xf32> to vector<32x1xf32>
    %47 = vector.broadcast %46 : vector<32x1xf32> to vector<32x256xf32>
    %48 = arith.subf %32, %47 : vector<32x256xf32>
    %49 = math.exp %48 : vector<32x256xf32>
    %cst_16 = arith.constant dense<0.000000e+00> : vector<32xf32>
    %50 = vector.multi_reduction <add>, %49, %cst_16 [1] : vector<32x256xf32> to vector<32xf32>
    %51 = vector.shape_cast %50 : vector<32xf32> to vector<32x1xf32>
    %52 = vector.broadcast %51 : vector<32x1xf32> to vector<32x256xf32>
    %53 = arith.divf %49, %52 : vector<32x256xf32>
    %cst_17 = arith.constant 3.906250e-03 : f32
    %54 = vector.broadcast %cst_17 : f32 to vector<32x256xf32>
    %55 = arith.mulf %33, %54 : vector<32x256xf32>
    %cst_18 = arith.constant dense<0.000000e+00> : vector<32x32xf32>
    %56 = tpu.matmul %55, %53, %cst_18 {dimension_numbers = #tpu.dot_dimension_numbers<[1], [1], [0], [0], [0, 0, 1, 0], [], []>} : vector<32x256xf32>, vector<32x256xf32>, vector<32x32xf32> -> vector<32x32xf32>
    %cst_19 = arith.constant dense<0.000000e+00> : vector<32x256xf32>
    %57 = tpu.matmul %56, %44, %cst_19 {dimension_numbers = #tpu.dot_dimension_numbers<[1], [0], [0], [1], [0, 0, 1, 1], [], []>} : vector<32x32xf32>, vector<32x256xf32>, vector<32x256xf32> -> vector<32x256xf32>
    %58 = vector.extract_strided_slice %3 {offsets = [64, 0], sizes = [32, 256], strides = [1, 1]} : vector<384x256xf32> to vector<32x256xf32>
    %59 = vector.extract_strided_slice %3 {offsets = [192, 0], sizes = [32, 256], strides = [1, 1]} : vector<384x256xf32> to vector<32x256xf32>
    %60 = vector.extract_strided_slice %3 {offsets = [320, 0], sizes = [32, 256], strides = [1, 1]} : vector<384x256xf32> to vector<32x256xf32>
    %cst_20 = arith.constant dense<0xFF800000> : vector<256xf32>
    %61 = vector.multi_reduction <maximumf>, %58, %cst_20 [0] : vector<32x256xf32> to vector<256xf32>
    %62 = vector.shape_cast %61 : vector<256xf32> to vector<1x256xf32>
    %63 = vector.broadcast %62 : vector<1x256xf32> to vector<32x256xf32>
    %64 = arith.subf %58, %63 : vector<32x256xf32>
    %65 = math.exp %64 : vector<32x256xf32>
    %cst_21 = arith.constant dense<0.000000e+00> : vector<256xf32>
    %66 = vector.multi_reduction <add>, %65, %cst_21 [0] : vector<32x256xf32> to vector<256xf32>
    %67 = vector.shape_cast %66 : vector<256xf32> to vector<1x256xf32>
    %cst_22 = arith.constant 0.176776692 : f32
    %68 = vector.broadcast %cst_22 : f32 to vector<1x256xf32>
    %69 = arith.divf %68, %67 : vector<1x256xf32>
    %70 = vector.broadcast %69 : vector<1x256xf32> to vector<32x256xf32>
    %71 = arith.mulf %65, %70 : vector<32x256xf32>
    %cst_23 = arith.constant dense<0xFF800000> : vector<32xf32>
    %72 = vector.multi_reduction <maximumf>, %59, %cst_23 [1] : vector<32x256xf32> to vector<32xf32>
    %73 = vector.shape_cast %72 : vector<32xf32> to vector<32x1xf32>
    %74 = vector.broadcast %73 : vector<32x1xf32> to vector<32x256xf32>
    %75 = arith.subf %59, %74 : vector<32x256xf32>
    %76 = math.exp %75 : vector<32x256xf32>
    %cst_24 = arith.constant dense<0.000000e+00> : vector<32xf32>
    %77 = vector.multi_reduction <add>, %76, %cst_24 [1] : vector<32x256xf32> to vector<32xf32>
    %78 = vector.shape_cast %77 : vector<32xf32> to vector<32x1xf32>
    %79 = vector.broadcast %78 : vector<32x1xf32> to vector<32x256xf32>
    %80 = arith.divf %76, %79 : vector<32x256xf32>
    %cst_25 = arith.constant 3.906250e-03 : f32
    %81 = vector.broadcast %cst_25 : f32 to vector<32x256xf32>
    %82 = arith.mulf %60, %81 : vector<32x256xf32>
    %cst_26 = arith.constant dense<0.000000e+00> : vector<32x32xf32>
    %83 = tpu.matmul %82, %80, %cst_26 {dimension_numbers = #tpu.dot_dimension_numbers<[1], [1], [0], [0], [0, 0, 1, 0], [], []>} : vector<32x256xf32>, vector<32x256xf32>, vector<32x32xf32> -> vector<32x32xf32>
    %cst_27 = arith.constant dense<0.000000e+00> : vector<32x256xf32>
    %84 = tpu.matmul %83, %71, %cst_27 {dimension_numbers = #tpu.dot_dimension_numbers<[1], [0], [0], [1], [0, 0, 1, 1], [], []>} : vector<32x32xf32>, vector<32x256xf32>, vector<32x256xf32> -> vector<32x256xf32>
    %85 = vector.extract_strided_slice %3 {offsets = [96, 0], sizes = [32, 256], strides = [1, 1]} : vector<384x256xf32> to vector<32x256xf32>
    %86 = vector.extract_strided_slice %3 {offsets = [224, 0], sizes = [32, 256], strides = [1, 1]} : vector<384x256xf32> to vector<32x256xf32>
    %87 = vector.extract_strided_slice %3 {offsets = [352, 0], sizes = [32, 256], strides = [1, 1]} : vector<384x256xf32> to vector<32x256xf32>
    %cst_28 = arith.constant dense<0xFF800000> : vector<256xf32>
    %88 = vector.multi_reduction <maximumf>, %85, %cst_28 [0] : vector<32x256xf32> to vector<256xf32>
    %89 = vector.shape_cast %88 : vector<256xf32> to vector<1x256xf32>
    %90 = vector.broadcast %89 : vector<1x256xf32> to vector<32x256xf32>
    %91 = arith.subf %85, %90 : vector<32x256xf32>
    %92 = math.exp %91 : vector<32x256xf32>
    %cst_29 = arith.constant dense<0.000000e+00> : vector<256xf32>
    %93 = vector.multi_reduction <add>, %92, %cst_29 [0] : vector<32x256xf32> to vector<256xf32>
    %94 = vector.shape_cast %93 : vector<256xf32> to vector<1x256xf32>
    %cst_30 = arith.constant 0.176776692 : f32
    %95 = vector.broadcast %cst_30 : f32 to vector<1x256xf32>
    %96 = arith.divf %95, %94 : vector<1x256xf32>
    %97 = vector.broadcast %96 : vector<1x256xf32> to vector<32x256xf32>
    %98 = arith.mulf %92, %97 : vector<32x256xf32>
    %cst_31 = arith.constant dense<0xFF800000> : vector<32xf32>
    %99 = vector.multi_reduction <maximumf>, %86, %cst_31 [1] : vector<32x256xf32> to vector<32xf32>
    %100 = vector.shape_cast %99 : vector<32xf32> to vector<32x1xf32>
    %101 = vector.broadcast %100 : vector<32x1xf32> to vector<32x256xf32>
    %102 = arith.subf %86, %101 : vector<32x256xf32>
    %103 = math.exp %102 : vector<32x256xf32>
    %cst_32 = arith.constant dense<0.000000e+00> : vector<32xf32>
    %104 = vector.multi_reduction <add>, %103, %cst_32 [1] : vector<32x256xf32> to vector<32xf32>
    %105 = vector.shape_cast %104 : vector<32xf32> to vector<32x1xf32>
    %106 = vector.broadcast %105 : vector<32x1xf32> to vector<32x256xf32>
    %107 = arith.divf %103, %106 : vector<32x256xf32>
    %cst_33 = arith.constant 3.906250e-03 : f32
    %108 = vector.broadcast %cst_33 : f32 to vector<32x256xf32>
    %109 = arith.mulf %87, %108 : vector<32x256xf32>
    %cst_34 = arith.constant dense<0.000000e+00> : vector<32x32xf32>
    %110 = tpu.matmul %109, %107, %cst_34 {dimension_numbers = #tpu.dot_dimension_numbers<[1], [1], [0], [0], [0, 0, 1, 0], [], []>} : vector<32x256xf32>, vector<32x256xf32>, vector<32x32xf32> -> vector<32x32xf32>
    %cst_35 = arith.constant dense<0.000000e+00> : vector<32x256xf32>
    %111 = tpu.matmul %110, %98, %cst_35 {dimension_numbers = #tpu.dot_dimension_numbers<[1], [0], [0], [1], [0, 0, 1, 1], [], []>} : vector<32x32xf32>, vector<32x256xf32>, vector<32x256xf32> -> vector<32x256xf32>
    %112 = tpu.concatenate %30, %57, %84, %111 in 0 : vector<32x256xf32>, vector<32x256xf32>, vector<32x256xf32>, vector<32x256xf32> -> vector<128x256xf32>
    %c0_36 = arith.constant 0 : index
    %c0_37 = arith.constant 0 : index
    %113 = vector.load %arg3[%c0_36, %c0_37] : memref<4x128xf32, #tpu.memory_space<vmem>>, vector<4x128xf32>
    %cst_38 = arith.constant dense<0.000000e+00> : vector<4x256xf32>
    %114 = tpu.matmul %113, %112, %cst_38 {dimension_numbers = #tpu.dot_dimension_numbers<[1], [0], [0], [1], [0, 0, 1, 1], [], []>} : vector<4x128xf32>, vector<128x256xf32>, vector<4x256xf32> -> vector<4x256xf32>
    %c0_39 = arith.constant 0 : index
    %c0_40 = arith.constant 0 : index
    %115 = vector.load %arg4[%c0_39, %c0_40] : memref<4x1xf32, #tpu.memory_space<vmem>>, vector<4x1xf32>
    %116 = vector.broadcast %115 : vector<4x1xf32> to vector<4x256xf32>
    %117 = arith.addf %114, %116 : vector<4x256xf32>
    %cst_41 = arith.constant dense<0.000000e+00> : vector<256xf32>
    %118 = vector.multi_reduction <add>, %117, %cst_41 [0] : vector<4x256xf32> to vector<256xf32>
    %119 = vector.shape_cast %118 : vector<256xf32> to vector<1x256xf32>
    %cst_42 = arith.constant 4.000000e+00 : f32
    %120 = vector.broadcast %cst_42 : f32 to vector<1x256xf32>
    %121 = arith.divf %119, %120 : vector<1x256xf32>
    %122 = vector.broadcast %121 : vector<1x256xf32> to vector<4x256xf32>
    %123 = arith.subf %117, %122 : vector<4x256xf32>
    %124 = arith.mulf %123, %123 : vector<4x256xf32>
    %cst_43 = arith.constant dense<0.000000e+00> : vector<256xf32>
    %125 = vector.multi_reduction <add>, %124, %cst_43 [0] : vector<4x256xf32> to vector<256xf32>
    %126 = vector.shape_cast %125 : vector<256xf32> to vector<1x256xf32>
    %cst_44 = arith.constant 4.000000e+00 : f32
    %127 = vector.broadcast %cst_44 : f32 to vector<1x256xf32>
    %128 = arith.divf %126, %127 : vector<1x256xf32>
    %129 = vector.broadcast %121 : vector<1x256xf32> to vector<4x256xf32>
    %130 = arith.subf %117, %129 : vector<4x256xf32>
    %cst_45 = arith.constant 9.99999974E-6 : f32
    %131 = vector.broadcast %cst_45 : f32 to vector<1x256xf32>
    %132 = arith.addf %128, %131 : vector<1x256xf32>
    %133 = math.rsqrt %132 : vector<1x256xf32>
    %134 = vector.broadcast %133 : vector<1x256xf32> to vector<4x256xf32>
    %135 = arith.mulf %130, %134 : vector<4x256xf32>
    %c0_46 = arith.constant 0 : index
    %c0_47 = arith.constant 0 : index
    %136 = vector.load %arg5[%c0_46, %c0_47] : memref<4x1xf32, #tpu.memory_space<vmem>>, vector<4x1xf32>
    %137 = vector.broadcast %136 : vector<4x1xf32> to vector<4x256xf32>
    %138 = arith.mulf %135, %137 : vector<4x256xf32>
    %c0_48 = arith.constant 0 : index
    %c0_49 = arith.constant 0 : index
    %c0_50 = arith.constant 0 : index
    %139 = vector.load %arg6[%c0_48, %c0_49, %c0_50] : memref<1x4x256xf32, #tpu.memory_space<vmem>>, vector<1x4x256xf32>
    %140 = vector.shape_cast %139 : vector<1x4x256xf32> to vector<4x256xf32>
    %141 = vector.shape_cast %138 : vector<4x256xf32> to vector<1x4x256xf32>
    tpu.vector_store %arg6[%c0_48, %c0_49, %c0_50], %141 {strides = array<i32>} : memref<1x4x256xf32, #tpu.memory_space<vmem>>, vector<1x4x256xf32>,
    return
  }
  func.func @transform_0(%arg0: i32) -> (i32, i32, i32) {
    %c0_i32 = arith.constant 0 : i32
    %c0_i32_0 = arith.constant 0 : i32
    %c0_i32_1 = arith.constant 0 : i32
    return %arg0, %c0_i32, %c0_i32_0 : i32, i32, i32
  }
  func.func @transform_1(%arg0: i32) -> (i32, i32) {
    %c0_i32 = arith.constant 0 : i32
    %c0_i32_0 = arith.constant 0 : i32
    %c0_i32_1 = arith.constant 0 : i32
    return %c0_i32, %c0_i32_0 : i32, i32
  }
  func.func @transform_2(%arg0: i32) -> (i32, i32) {
    %c0_i32 = arith.constant 0 : i32
    %c0_i32_0 = arith.constant 0 : i32
    %c0_i32_1 = arith.constant 0 : i32
    return %c0_i32, %c0_i32_0 : i32, i32
  }
  func.func @transform_3(%arg0: i32) -> (i32, i32) {
    %c0_i32 = arith.constant 0 : i32
    %c0_i32_0 = arith.constant 0 : i32
    %c0_i32_1 = arith.constant 0 : i32
    return %c0_i32, %c0_i32_0 : i32, i32
  }
  func.func @transform_4(%arg0: i32) -> (i32, i32) {
    %c0_i32 = arith.constant 0 : i32
    %c0_i32_0 = arith.constant 0 : i32
    %c0_i32_1 = arith.constant 0 : i32
    return %c0_i32, %c0_i32_0 : i32, i32
  }
  func.func @transform_5(%arg0: i32) -> (i32, i32, i32) {
    %c0_i32 = arith.constant 0 : i32
    %c0_i32_0 = arith.constant 0 : i32
    %c0_i32_1 = arith.constant 0 : i32
    return %arg0, %c0_i32, %c0_i32_0 : i32, i32, i32
  }
}

</mosaic_0001>

<llo_original>
// kernel: tpu_custom_call.1
$region0: #{tpu_custom_call.1}
  #allocation0 [shape = 'u32[]', space=smem, size = 0x4, offset = 0x4, fixed_abs, tag = 'smem constant byte address 0x4 - core index']
  #allocation1 [shape = 'u32[144,128]{1,0:T(1,128)}', space=vmem, size = 0x12000, scoped, tag = 'internal scratch']
  %s0 = inlined_call_operand.vmem [shape: f32[2,4,256], index: 0, kind: input, shape index: {}]
  %s1 = inlined_call_operand.vmem [shape: f32[384,4], index: 1, kind: input, shape index: {}]
  %s2 = inlined_call_operand.vmem [shape: f32[4,128], index: 2, kind: input, shape index: {}]
  %s3 = inlined_call_operand.vmem [shape: f32[4,1], index: 3, kind: input, shape index: {}]
  %s4 = inlined_call_operand.vmem [shape: f32[4,1], index: 4, kind: input, shape index: {}]
  %s5 = inlined_call_operand.hbm [shape: f32[2,4,256], index: 5, kind: output, shape index: {}]
  %s6 = sld [smem:[#allocation0]]
  $region53: #{tpu_custom_call.1} parent=0
    _
  %s8 = ssub.s32 1, %s6
  %s9 = scalar_select 0, %s8, %s6
  $region1: #{tpu_custom_call.1} parent=0
    #allocation2 [shape = 'u8[8192]{0}', space=vmem, size = 0x2000, scoped, tag = 'output window, operand 0']
    #allocation3 [shape = 's32[2]{0}', space=sflag, size = 0x8, scoped, tag = 'scoped memory for tpu_custom_call.1']
    %10 = vsyncpa [#allocation3], 0
    %s11 = scalar_lea.sflag [#allocation3], 1
    %12 = vsyncpa %s11, 0
    loop: start=0, step=1, limit=4
    $region2: #{tpu_custom_call.1} parent=1 // loop_pre_header
      _
    $region3: #{tpu_custom_call.1} parent=1 // loop_header
      %s14 = sphi 0, %s18
      %p15 = scmp.ge.s32.totalorder %s14, 4
      %s24 = sphi 0, %s26
      %s27 = sphi 0, %s24
      %s28 = sphi 0, %s27
      %s44 = sphi 0, %s28
      %s48 = sphi 0, %s48
      %s50 = sphi 0, %s48
      %s51 = sphi 0, %s50
      %s65 = sphi 0, %s51
      %s69 = sphi 0, %s69
      %s71 = sphi 0, %s69
      %s72 = sphi 0, %s71
      %s86 = sphi 0, %s72
      %s90 = sphi 0, %s90
      %s92 = sphi 0, %s90
      %s93 = sphi 0, %s92
      %s107 = sphi 0, %s93
      %s111 = sphi 0, %s111
      %s113 = sphi 0, %s111
      %s114 = sphi 0, %s113
      %s128 = sphi 0, %s114
      %s134 = sphi 0, %s136
      %s137 = sphi 0, %s134
      %s138 = sphi 0, %s137
      %s154 = sphi 0, %s138
    $region4: #{tpu_custom_call.1} parent=1 // loop_header_branch
      %17 = sbr.rel (%p15) target = $region8
    $region5: #{tpu_custom_call.1} parent=1 // loop_body
      %s19 = ssub.s32 %s14, 1
      %s20 = ssub.s32 %s14, 2
      %s21 = sadd.s32 %s14, 1
      %s22 = ssub.s32 %s14, %s21
      %p23 = scmp.eq.s32.totalorder %s22, 0
      %s25 = sadd.s32 %s24, 1
      %s26 = scalar_select %p23, %s24, %s25
      %p29 = pneg %p23
      %p30 = scmp.eq.s32.totalorder %s14, 1
      %p31 = por %p29, %p30
      %p32 = scmp.ne.s32.totalorder %s24, %s27
      %p33 = scmp.eq.s32.totalorder %s14, 0
      %p34 = por %p32, %p33
      %p35 = scmp.ne.s32.totalorder %s24, %s27
      %p36 = scmp.eq.s32.totalorder %s19, 1
      %p37 = por %p35, %p36
      %p38 = scmp.ne.s32.totalorder %s27, %s28
      %p39 = scmp.eq.s32.totalorder %s19, 0
      %p40 = por %p38, %p39
      %p41 = scmp.ne.s32.totalorder %s27, %s28
      %p42 = scmp.eq.s32.totalorder %s20, 1
      %p43 = por %p41, %p42
      %p45 = scmp.ne.s32.totalorder %s28, %s44
      %p46 = scmp.eq.s32.totalorder %s20, 0
      %p47 = por %p45, %p46
      %s49 = sadd.s32 %s48, 1
      %p52 = scmp.eq.s32.totalorder %s14, 1
      %p53 = scmp.ne.s32.totalorder %s48, %s50
      %p54 = scmp.eq.s32.totalorder %s14, 0
      %p55 = por %p53, %p54
      %p56 = scmp.ne.s32.totalorder %s48, %s50
      %p57 = scmp.eq.s32.totalorder %s19, 1
      %p58 = por %p56, %p57
      %p59 = scmp.ne.s32.totalorder %s50, %s51
      %p60 = scmp.eq.s32.totalorder %s19, 0
      %p61 = por %p59, %p60
      %p62 = scmp.ne.s32.totalorder %s50, %s51
      %p63 = scmp.eq.s32.totalorder %s20, 1
      %p64 = por %p62, %p63
      %p66 = scmp.ne.s32.totalorder %s51, %s65
      %p67 = scmp.eq.s32.totalorder %s20, 0
      %p68 = por %p66, %p67
      %s70 = sadd.s32 %s69, 1
      %p73 = scmp.eq.s32.totalorder %s14, 1
      %p74 = scmp.ne.s32.totalorder %s69, %s71
      %p75 = scmp.eq.s32.totalorder %s14, 0
      %p76 = por %p74, %p75
      %p77 = scmp.ne.s32.totalorder %s69, %s71
      %p78 = scmp.eq.s32.totalorder %s19, 1
      %p79 = por %p77, %p78
      %p80 = scmp.ne.s32.totalorder %s71, %s72
      %p81 = scmp.eq.s32.totalorder %s19, 0
      %p82 = por %p80, %p81
      %p83 = scmp.ne.s32.totalorder %s71, %s72
      %p84 = scmp.eq.s32.totalorder %s20, 1
      %p85 = por %p83, %p84
      %p87 = scmp.ne.s32.totalorder %s72, %s86
      %p88 = scmp.eq.s32.totalorder %s20, 0
      %p89 = por %p87, %p88
      %s91 = sadd.s32 %s90, 1
      %p94 = scmp.eq.s32.totalorder %s14, 1
      %p95 = scmp.ne.s32.totalorder %s90, %s92
      %p96 = scmp.eq.s32.totalorder %s14, 0
      %p97 = por %p95, %p96
      %p98 = scmp.ne.s32.totalorder %s90, %s92
      %p99 = scmp.eq.s32.totalorder %s19, 1
      %p100 = por %p98, %p99
      %p101 = scmp.ne.s32.totalorder %s92, %s93
      %p102 = scmp.eq.s32.totalorder %s19, 0
      %p103 = por %p101, %p102
      %p104 = scmp.ne.s32.totalorder %s92, %s93
      %p105 = scmp.eq.s32.totalorder %s20, 1
      %p106 = por %p104, %p105
      %p108 = scmp.ne.s32.totalorder %s93, %s107
      %p109 = scmp.eq.s32.totalorder %s20, 0
      %p110 = por %p108, %p109
      %s112 = sadd.s32 %s111, 1
      %p115 = scmp.eq.s32.totalorder %s14, 1
      %p116 = scmp.ne.s32.totalorder %s111, %s113
      %p117 = scmp.eq.s32.totalorder %s14, 0
      %p118 = por %p116, %p117
      %p119 = scmp.ne.s32.totalorder %s111, %s113
      %p120 = scmp.eq.s32.totalorder %s19, 1
      %p121 = por %p119, %p120
      %p122 = scmp.ne.s32.totalorder %s113, %s114
      %p123 = scmp.eq.s32.totalorder %s19, 0
      %p124 = por %p122, %p123
      %p125 = scmp.ne.s32.totalorder %s113, %s114
      %p126 = scmp.eq.s32.totalorder %s20, 1
      %p127 = por %p125, %p126
      %p129 = scmp.ne.s32.totalorder %s114, %s128
      %p130 = scmp.eq.s32.totalorder %s20, 0
      %p131 = por %p129, %p130
      %s132 = ssub.s32 %s14, %s21
      %p133 = scmp.eq.s32.totalorder %s132, 0
      %s135 = sadd.s32 %s134, 1
      %s136 = scalar_select %p133, %s134, %s135
      %p139 = pneg %p133
      %p140 = scmp.eq.s32.totalorder %s14, 1
      %p141 = por %p139, %p140
      %p142 = scmp.ne.s32.totalorder %s134, %s137
      %p143 = scmp.eq.s32.totalorder %s14, 0
      %p144 = por %p142, %p143
      %p145 = scmp.ne.s32.totalorder %s134, %s137
      %p146 = scmp.eq.s32.totalorder %s19, 1
      %p147 = por %p145, %p146
      %p148 = scmp.ne.s32.totalorder %s137, %s138
      %p149 = scmp.eq.s32.totalorder %s19, 0
      %p150 = por %p148, %p149
      %p151 = scmp.ne.s32.totalorder %s137, %s138
      %p152 = scmp.eq.s32.totalorder %s20, 1
      %p153 = por %p151, %p152
      %p155 = scmp.ne.s32.totalorder %s138, %s154
      %p156 = scmp.eq.s32.totalorder %s20, 0
      %p157 = por %p155, %p156
      %p158 = scmp.le.s32.totalorder 1, %s14
      %p159 = scmp.lt.s32.totalorder %s14, 3
      %p160 = pnand %p158, %p159
      %p161 = pneg %p160
      // Predicated region
      $region9: #{tpu_custom_call.1} parent=5 // pred_check
        _
      $region10: #{tpu_custom_call.1} parent=5 // pred_check_branch
        %163 = sbr.rel (%p160) target = $region12
      $region11: #{tpu_custom_call.1} parent=5 // pred_region
        %s164 = ssub.s32 %s14, 1
        // Predicated region
        $region13: #{tpu_custom_call.1} parent=11 // pred_check
          %p165 = pneg %p61
        $region14: #{tpu_custom_call.1} parent=11 // pred_check_branch
          %167 = sbr.rel (%p165) target = $region16
        $region15: #{tpu_custom_call.1} parent=11 // pred_region
          _
        $region16: #{tpu_custom_call.1} parent=11 // pred_fallthru
          _
        // Predicated region
        $region17: #{tpu_custom_call.1} parent=11 // pred_check
          %p168 = pneg %p82
        $region18: #{tpu_custom_call.1} parent=11 // pred_check_branch
          %170 = sbr.rel (%p168) target = $region20
        $region19: #{tpu_custom_call.1} parent=11 // pred_region
          _
        $region20: #{tpu_custom_call.1} parent=11 // pred_fallthru
          _
        // Predicated region
        $region21: #{tpu_custom_call.1} parent=11 // pred_check
          %p171 = pneg %p103
        $region22: #{tpu_custom_call.1} parent=11 // pred_check_branch
          %173 = sbr.rel (%p171) target = $region24
        $region23: #{tpu_custom_call.1} parent=11 // pred_region
          _
        $region24: #{tpu_custom_call.1} parent=11 // pred_fallthru
          _
        // Predicated region
        $region25: #{tpu_custom_call.1} parent=11 // pred_check
          %p174 = pneg %p124
        $region26: #{tpu_custom_call.1} parent=11 // pred_check_branch
          %176 = sbr.rel (%p174) target = $region28
        $region27: #{tpu_custom_call.1} parent=11 // pred_region
          _
        $region28: #{tpu_custom_call.1} parent=11 // pred_fallthru
          _
      $region12: #{tpu_custom_call.1} parent=5 // pred_fallthru
        _
      %p177 = scmp.lt.s32.totalorder %s14, 2
      // Predicated region
      $region29: #{tpu_custom_call.1} parent=5 // pred_check
        %p178 = pneg %p177
      $region30: #{tpu_custom_call.1} parent=5 // pred_check_branch
        %180 = sbr.rel (%p178) target = $region32
      $region31: #{tpu_custom_call.1} parent=5 // pred_region
        // Predicated region
        $region33: #{tpu_custom_call.1} parent=31 // pred_check
          %p181 = pneg %p34
        $region34: #{tpu_custom_call.1} parent=31 // pred_check_branch
          %183 = sbr.rel (%p181) target = $region36
        $region35: #{tpu_custom_call.1} parent=31 // pred_region
          %p184 = scmp.lt.s32.totalorder %s14, 1
          %s185 = scalar_select %p184, %s14, 1
          %s186 = smul.addr %s185, 2
          %s187 = smul.addr %s186, 4
          %s188 = scalar_lea.vmem %s0, %s187
        $region36: #{tpu_custom_call.1} parent=31 // pred_fallthru
          _
      $region32: #{tpu_custom_call.1} parent=5 // pred_fallthru
        _
      %p189 = scmp.le.s32.totalorder 1, %s14
      %p190 = scmp.lt.s32.totalorder %s14, 3
      %p191 = pnand %p189, %p190
      %p192 = pneg %p191
      // Predicated region
      $region37: #{tpu_custom_call.1} parent=5 // pred_check
        _
      $region38: #{tpu_custom_call.1} parent=5 // pred_check_branch
        %194 = sbr.rel (%p191) target = $region40
      $region39: #{tpu_custom_call.1} parent=5 // pred_region
        %s195 = ssub.s32 %s14, 1
        %p196 = scmp.lt.s32.totalorder %s19, 1
        %s197 = scalar_select %p196, %s19, 1
        %s198 = smul.addr %s197, 2
        %s199 = smul.addr %s198, 4
        %s200 = scalar_lea.vmem %s0, %s199
        %p201 = pneg %p40
        %p202 = pneg %p37
        %p203 = pneg %p61
        %p204 = pneg %p58
        %p205 = pneg %p82
        %p206 = pneg %p79
        %p207 = pneg %p103
        %p208 = pneg %p100
        %p209 = pneg %p124
        %p210 = pneg %p121
        %p211 = pneg %p150
        %p212 = pneg %p147
        %s213 = sand.u32 %s137, 1
        %s214 = scalar_lea.sflag [#allocation3], %s213
        %s215 = sand.u32 %s137, 1
        %s216 = smul.addr %s215, 8
        %s217 = scalar_lea.vmem [#allocation2], %s216
        %p218 = scmp.lt.s32.totalorder %s19, 1
        %s219 = scalar_select %p218, %s19, 1
        %s220 = smul.addr %s219, 2
        %s221 = smul.addr %s220, 4
        %s222 = scalar_lea.vmem %s0, %s221
        %v223 = vld [vmem:[%s222] sm:$0xff]
        %v224 = vld [vmem:[%s1] sm:$0xff]
        %v225 = vld [vmem:[%s1 + $0x8] sm:$0xff]
        %v226 = vld [vmem:[%s1 + $0x10] sm:$0xff]
        %v227 = vld [vmem:[%s1 + $0x18] sm:$0xff]
        %v228 = vld [vmem:[%s1 + $0x20] sm:$0xff]
        %v229 = vld [vmem:[%s1 + $0x28] sm:$0xff]
        %v230 = vld [vmem:[%s1 + $0x30] sm:$0xff]
        %v231 = vld [vmem:[%s1 + $0x38] sm:$0xff]
        %v232 = vld [vmem:[%s1 + $0x40] sm:$0xff]
        %v233 = vld [vmem:[%s1 + $0x48] sm:$0xff]
        %v234 = vld [vmem:[%s1 + $0x50] sm:$0xff]
        %v235 = vld [vmem:[%s1 + $0x58] sm:$0xff]
        %v236 = vld [vmem:[%s1 + $0x60] sm:$0xff]
        %v237 = vld [vmem:[%s1 + $0x68] sm:$0xff]
        %v238 = vld [vmem:[%s1 + $0x70] sm:$0xff]
        %v239 = vld [vmem:[%s1 + $0x78] sm:$0xff]
        %v240 = vld [vmem:[%s1 + $0x80] sm:$0xff]
        %v241 = vld [vmem:[%s1 + $0x88] sm:$0xff]
        %v242 = vld [vmem:[%s1 + $0x90] sm:$0xff]
        %v243 = vld [vmem:[%s1 + $0x98] sm:$0xff]
        %v244 = vld [vmem:[%s1 + $0xa0] sm:$0xff]
        %v245 = vld [vmem:[%s1 + $0xa8] sm:$0xff]
        %v246 = vld [vmem:[%s1 + $0xb0] sm:$0xff]
        %v247 = vld [vmem:[%s1 + $0xb8] sm:$0xff]
        %v248 = vld [vmem:[%s1 + $0xc0] sm:$0xff]
        %v249 = vld [vmem:[%s1 + $0xc8] sm:$0xff]
        %v250 = vld [vmem:[%s1 + $0xd0] sm:$0xff]
        %v251 = vld [vmem:[%s1 + $0xd8] sm:$0xff]
        %v252 = vld [vmem:[%s1 + $0xe0] sm:$0xff]
        %v253 = vld [vmem:[%s1 + $0xe8] sm:$0xff]
        %v254 = vld [vmem:[%s1 + $0xf0] sm:$0xff]
        %v255 = vld [vmem:[%s1 + $0xf8] sm:$0xff]
        %v256 = vld [vmem:[%s1 + $0x100] sm:$0xff]
        %v257 = vld [vmem:[%s1 + $0x108] sm:$0xff]
        %v258 = vld [vmem:[%s1 + $0x110] sm:$0xff]
        %v259 = vld [vmem:[%s1 + $0x118] sm:$0xff]
        %v260 = vld [vmem:[%s1 + $0x120] sm:$0xff]
        %v261 = vld [vmem:[%s1 + $0x128] sm:$0xff]
        %v262 = vld [vmem:[%s1 + $0x130] sm:$0xff]
        %v263 = vld [vmem:[%s1 + $0x138] sm:$0xff]
        %v264 = vld [vmem:[%s1 + $0x140] sm:$0xff]
        %v265 = vld [vmem:[%s1 + $0x148] sm:$0xff]
        %v266 = vld [vmem:[%s1 + $0x150] sm:$0xff]
        %v267 = vld [vmem:[%s1 + $0x158] sm:$0xff]
        %v268 = vld [vmem:[%s1 + $0x160] sm:$0xff]
        %v269 = vld [vmem:[%s1 + $0x168] sm:$0xff]
        %v270 = vld [vmem:[%s1 + $0x170] sm:$0xff]
        %v271 = vld [vmem:[%s1 + $0x178] sm:$0xff]
        %v273 = vcombine.high %v223, %v223
        %vm274 = vcmask 31744
        %v276 = vsel %vm274, %v224, 0
        %v279 = vsel %vm274, %v225, 0
        %v282 = vsel %vm274, %v226, 0
        %v285 = vsel %vm274, %v227, 0
        %v288 = vsel %vm274, %v228, 0
        %v291 = vsel %vm274, %v229, 0
        %v294 = vsel %vm274, %v230, 0
        %v297 = vsel %vm274, %v231, 0
        %v300 = vsel %vm274, %v232, 0
        %v303 = vsel %vm274, %v233, 0
        %v306 = vsel %vm274, %v234, 0
        %v309 = vsel %vm274, %v235, 0
        %v312 = vsel %vm274, %v236, 0
        %v315 = vsel %vm274, %v237, 0
        %v318 = vsel %vm274, %v238, 0
        %v321 = vsel %vm274, %v239, 0
        %v324 = vsel %vm274, %v240, 0
        %v327 = vsel %vm274, %v241, 0
        %v330 = vsel %vm274, %v242, 0
        %v333 = vsel %vm274, %v243, 0
        %v336 = vsel %vm274, %v244, 0
        %v339 = vsel %vm274, %v245, 0
        %v342 = vsel %vm274, %v246, 0
        %v345 = vsel %vm274, %v247, 0
        %v348 = vsel %vm274, %v248, 0
        %v351 = vsel %vm274, %v249, 0
        %v354 = vsel %vm274, %v250, 0
        %v357 = vsel %vm274, %v251, 0
        %v360 = vsel %vm274, %v252, 0
        %v363 = vsel %vm274, %v253, 0
        %v366 = vsel %vm274, %v254, 0
        %v369 = vsel %vm274, %v255, 0
        %v372 = vsel %vm274, %v256, 0
        %v375 = vsel %vm274, %v257, 0
        %v378 = vsel %vm274, %v258, 0
        %v381 = vsel %vm274, %v259, 0
        %v384 = vsel %vm274, %v260, 0
        %v387 = vsel %vm274, %v261, 0
        %v390 = vsel %vm274, %v262, 0
        %v393 = vsel %vm274, %v263, 0
        %v396 = vsel %vm274, %v264, 0
        %v399 = vsel %vm274, %v265, 0
        %v402 = vsel %vm274, %v266, 0
        %v405 = vsel %vm274, %v267, 0
        %v408 = vsel %vm274, %v268, 0
        %v411 = vsel %vm274, %v269, 0
        %v414 = vsel %vm274, %v270, 0
        %v417 = vsel %vm274, %v271, 0
        %vm419 = vcmask 1043456
        %v420 = vsel %vm419, %v223, 0
        %v422 = vsel %vm419, %v273, 0
        %424 = vmatprep.subr.mxu0 %v422
        %425 = vmatpush1.msra.mxu0 %v420
        %426 = vmatprep.subr.mxu0 0.0
        %427 = vmatpush1.msra.mxu0 0.0
        %428 = vmatprep.subr.mxu0 0.0
        %429 = vmatpush1.msra.mxu0 0.0
        %430 = vmatprep.subr.mxu0 0.0
        %431 = vmatpush1.msra.mxu0 0.0
        %432 = vmatprep.subr.mxu0 0.0
        %433 = vmatpush1.msra.mxu0 0.0
        %434 = vmatprep.subr.mxu0 0.0
        %435 = vmatpush1.msra.mxu0 0.0
        %436 = vmatprep.subr.mxu0 0.0
        %437 = vmatpush1.msra.mxu0 0.0
        %438 = vmatprep.subr.mxu0 0.0
        %439 = vmatpush1.msra.mxu0 0.0
        %440 = vmatprep.subr.mxu0 0.0
        %441 = vmatpush1.msra.mxu0 0.0
        %442 = vmatprep.subr.mxu0 0.0
        %443 = vmatpush1.msra.mxu0 0.0
        %444 = vmatprep.subr.mxu0 0.0
        %445 = vmatpush1.msra.mxu0 0.0
        %446 = vmatprep.subr.mxu0 0.0
        %447 = vmatpush1.msra.mxu0 0.0
        %448 = vmatprep.subr.mxu0 0.0
        %449 = vmatpush1.msra.mxu0 0.0
        %450 = vmatprep.subr.mxu0 0.0
        %451 = vmatpush1.msra.mxu0 0.0
        %452 = vmatprep.subr.mxu0 0.0
        %453 = vmatpush1.msra.mxu0 0.0
        %454 = vmatprep.subr.mxu0 0.0
        %455 = vmatpush1.msra.mxu0 0.0
        %456 = vmatprep.subr.mxu0 0.0
        %457 = vmatpush1.msra.mxu0 0.0
        %458 = vmatprep.subr.mxu0 0.0
        %459 = vmatpush1.msra.mxu0 0.0
        %460 = vmatprep.subr.mxu0 0.0
        %461 = vmatpush1.msra.mxu0 0.0
        %462 = vmatprep.subr.mxu0 0.0
        %463 = vmatpush1.msra.mxu0 0.0
        %464 = vmatprep.subr.mxu0 0.0
        %465 = vmatpush1.msra.mxu0 0.0
        %466 = vmatprep.subr.mxu0 0.0
        %467 = vmatpush1.msra.mxu0 0.0
        %468 = vmatprep.subr.mxu0 0.0
        %469 = vmatpush1.msra.mxu0 0.0
        %470 = vmatprep.subr.mxu0 0.0
        %471 = vmatpush1.msra.mxu0 0.0
        %472 = vmatprep.subr.mxu0 0.0
        %473 = vmatpush1.msra.mxu0 0.0
        %474 = vmatprep.subr.mxu0 0.0
        %475 = vmatpush1.msra.mxu0 0.0
        %476 = vmatprep.subr.mxu0 0.0
        %477 = vmatpush1.msra.mxu0 0.0
        %478 = vmatprep.subr.mxu0 0.0
        %479 = vmatpush1.msra.mxu0 0.0
        %480 = vmatprep.subr.mxu0 0.0
        %481 = vmatpush1.msra.mxu0 0.0
        %482 = vmatprep.subr.mxu0 0.0
        %483 = vmatpush1.msra.mxu0 0.0
        %484 = vmatprep.subr.mxu0 0.0
        %485 = vmatpush1.msra.mxu0 0.0
        %486 = vmatprep.subr.mxu0 0.0
        %487 = vmatpush1.msra.mxu0 0.0
        %488 = vmatprep.mubr.f32.mxu0 0.0
        %489 = vmatmul.mubr.f32.gmra.mrb[0].mxu0 %v276
        %v490 = vpop.f32.mrb[0].mxu0
        %v491 = vadd.f32 0.0, %v490
        %v492 = vpop.f32.mrb[0].mxu0
        %v493 = vadd.f32 0.0, %v492
        %494 = vmatprep.mubr.f32.mxu0 0.0
        %495 = vmatmul.mubr.f32.gmra.mrb[0].mxu0 %v279
        %v496 = vpop.f32.mrb[0].mxu0
        %v497 = vadd.f32 0.0, %v496
        %v498 = vpop.f32.mrb[0].mxu0
        %v499 = vadd.f32 0.0, %v498
        %500 = vmatprep.mubr.f32.mxu0 0.0
        %501 = vmatmul.mubr.f32.gmra.mrb[0].mxu0 %v282
        %v502 = vpop.f32.mrb[0].mxu0
        %v503 = vadd.f32 0.0, %v502
        %v504 = vpop.f32.mrb[0].mxu0
        %v505 = vadd.f32 0.0, %v504
        %506 = vmatprep.mubr.f32.mxu0 0.0
        %507 = vmatmul.mubr.f32.gmra.mrb[0].mxu0 %v285
        %v508 = vpop.f32.mrb[0].mxu0
        %v509 = vadd.f32 0.0, %v508
        %v510 = vpop.f32.mrb[0].mxu0
        %v511 = vadd.f32 0.0, %v510
        %512 = vmatprep.mubr.f32.mxu0 0.0
        %513 = vmatmul.mubr.f32.gmra.mrb[0].mxu0 %v288
        %v514 = vpop.f32.mrb[0].mxu0
        %v515 = vadd.f32 0.0, %v514
        %v516 = vpop.f32.mrb[0].mxu0
        %v517 = vadd.f32 0.0, %v516
        %518 = vmatprep.mubr.f32.mxu0 0.0
        %519 = vmatmul.mubr.f32.gmra.mrb[0].mxu0 %v291
        %v520 = vpop.f32.mrb[0].mxu0
        %v521 = vadd.f32 0.0, %v520
        %v522 = vpop.f32.mrb[0].mxu0
        %v523 = vadd.f32 0.0, %v522
        %524 = vmatprep.mubr.f32.mxu0 0.0
        %525 = vmatmul.mubr.f32.gmra.mrb[0].mxu0 %v294
        %v526 = vpop.f32.mrb[0].mxu0
        %v527 = vadd.f32 0.0, %v526
        %v528 = vpop.f32.mrb[0].mxu0
        %v529 = vadd.f32 0.0, %v528
        %530 = vmatprep.mubr.f32.mxu0 0.0
        %531 = vmatmul.mubr.f32.gmra.mrb[0].mxu0 %v297
        %v532 = vpop.f32.mrb[0].mxu0
        %v533 = vadd.f32 0.0, %v532
        %v534 = vpop.f32.mrb[0].mxu0
        %v535 = vadd.f32 0.0, %v534
        %536 = vmatprep.mubr.f32.mxu0 0.0
        %537 = vmatmul.mubr.f32.gmra.mrb[0].mxu0 %v300
        %v538 = vpop.f32.mrb[0].mxu0
        %v539 = vadd.f32 0.0, %v538
        %v540 = vpop.f32.mrb[0].mxu0
        %v541 = vadd.f32 0.0, %v540
        %542 = vmatprep.mubr.f32.mxu0 0.0
        %543 = vmatmul.mubr.f32.gmra.mrb[0].mxu0 %v303
        %v544 = vpop.f32.mrb[0].mxu0
        %v545 = vadd.f32 0.0, %v544
        %v546 = vpop.f32.mrb[0].mxu0
        %v547 = vadd.f32 0.0, %v546
        %548 = vmatprep.mubr.f32.mxu0 0.0
        %549 = vmatmul.mubr.f32.gmra.mrb[0].mxu0 %v306
        %v550 = vpop.f32.mrb[0].mxu0
        %v551 = vadd.f32 0.0, %v550
        %v552 = vpop.f32.mrb[0].mxu0
        %v553 = vadd.f32 0.0, %v552
        %554 = vmatprep.mubr.f32.mxu0 0.0
        %555 = vmatmul.mubr.f32.gmra.mrb[0].mxu0 %v309
        %v556 = vpop.f32.mrb[0].mxu0
        %v557 = vadd.f32 0.0, %v556
        %v558 = vpop.f32.mrb[0].mxu0
        %v559 = vadd.f32 0.0, %v558
        %560 = vmatprep.mubr.f32.mxu0 0.0
        %561 = vmatmul.mubr.f32.gmra.mrb[0].mxu0 %v312
        %v562 = vpop.f32.mrb[0].mxu0
        %v563 = vadd.f32 0.0, %v562
        %v564 = vpop.f32.mrb[0].mxu0
        %v565 = vadd.f32 0.0, %v564
        %566 = vmatprep.mubr.f32.mxu0 0.0
        %567 = vmatmul.mubr.f32.gmra.mrb[0].mxu0 %v315
        %v568 = vpop.f32.mrb[0].mxu0
        %v569 = vadd.f32 0.0, %v568
        %v570 = vpop.f32.mrb[0].mxu0
        %v571 = vadd.f32 0.0, %v570
        %572 = vmatprep.mubr.f32.mxu0 0.0
        %573 = vmatmul.mubr.f32.gmra.mrb[0].mxu0 %v318
        %v574 = vpop.f32.mrb[0].mxu0
        %v575 = vadd.f32 0.0, %v574
        %v576 = vpop.f32.mrb[0].mxu0
        %v577 = vadd.f32 0.0, %v576
        %578 = vmatprep.mubr.f32.mxu0 0.0
        %579 = vmatmul.mubr.f32.gmra.mrb[0].mxu0 %v321
        %v580 = vpop.f32.mrb[0].mxu0
        %v581 = vadd.f32 0.0, %v580
        %v582 = vpop.f32.mrb[0].mxu0
        %v583 = vadd.f32 0.0, %v582
        %584 = vmatprep.mubr.f32.mxu0 0.0
        %585 = vmatmul.mubr.f32.gmra.mrb[0].mxu0 %v324
        %v586 = vpop.f32.mrb[0].mxu0
        %v587 = vadd.f32 0.0, %v586
        %v588 = vpop.f32.mrb[0].mxu0
        %v589 = vadd.f32 0.0, %v588
        %590 = vmatprep.mubr.f32.mxu0 0.0
        %591 = vmatmul.mubr.f32.gmra.mrb[0].mxu0 %v327
        %v592 = vpop.f32.mrb[0].mxu0
        %v593 = vadd.f32 0.0, %v592
        %v594 = vpop.f32.mrb[0].mxu0
        %v595 = vadd.f32 0.0, %v594
        %596 = vmatprep.mubr.f32.mxu0 0.0
        %597 = vmatmul.mubr.f32.gmra.mrb[0].mxu0 %v330
        %v598 = vpop.f32.mrb[0].mxu0
        %v599 = vadd.f32 0.0, %v598
        %v600 = vpop.f32.mrb[0].mxu0
        %v601 = vadd.f32 0.0, %v600
        %602 = vmatprep.mubr.f32.mxu0 0.0
        %603 = vmatmul.mubr.f32.gmra.mrb[0].mxu0 %v333
        %v604 = vpop.f32.mrb[0].mxu0
        %v605 = vadd.f32 0.0, %v604
        %v606 = vpop.f32.mrb[0].mxu0
        %v607 = vadd.f32 0.0, %v606
        %608 = vmatprep.mubr.f32.mxu0 0.0
        %609 = vmatmul.mubr.f32.gmra.mrb[0].mxu0 %v336
        %v610 = vpop.f32.mrb[0].mxu0
        %v611 = vadd.f32 0.0, %v610
        %v612 = vpop.f32.mrb[0].mxu0
        %v613 = vadd.f32 0.0, %v612
        %614 = vmatprep.mubr.f32.mxu0 0.0
        %615 = vmatmul.mubr.f32.gmra.mrb[0].mxu0 %v339
        %v616 = vpop.f32.mrb[0].mxu0
        %v617 = vadd.f32 0.0, %v616
        %v618 = vpop.f32.mrb[0].mxu0
        %v619 = vadd.f32 0.0, %v618
        %620 = vmatprep.mubr.f32.mxu0 0.0
        %621 = vmatmul.mubr.f32.gmra.mrb[0].mxu0 %v342
        %v622 = vpop.f32.mrb[0].mxu0
        %v623 = vadd.f32 0.0, %v622
        %v624 = vpop.f32.mrb[0].mxu0
        %v625 = vadd.f32 0.0, %v624
        %626 = vmatprep.mubr.f32.mxu0 0.0
        %627 = vmatmul.mubr.f32.gmra.mrb[0].mxu0 %v345
        %v628 = vpop.f32.mrb[0].mxu0
        %v629 = vadd.f32 0.0, %v628
        %v630 = vpop.f32.mrb[0].mxu0
        %v631 = vadd.f32 0.0, %v630
        %632 = vmatprep.mubr.f32.mxu0 0.0
        %633 = vmatmul.mubr.f32.gmra.mrb[0].mxu0 %v348
        %v634 = vpop.f32.mrb[0].mxu0
        %v635 = vadd.f32 0.0, %v634
        %v636 = vpop.f32.mrb[0].mxu0
        %v637 = vadd.f32 0.0, %v636
        %638 = vmatprep.mubr.f32.mxu0 0.0
        %639 = vmatmul.mubr.f32.gmra.mrb[0].mxu0 %v351
        %v640 = vpop.f32.mrb[0].mxu0
        %v641 = vadd.f32 0.0, %v640
        %v642 = vpop.f32.mrb[0].mxu0
        %v643 = vadd.f32 0.0, %v642
        %644 = vmatprep.mubr.f32.mxu0 0.0
        %645 = vmatmul.mubr.f32.gmra.mrb[0].mxu0 %v354
        %v646 = vpop.f32.mrb[0].mxu0
        %v647 = vadd.f32 0.0, %v646
        %v648 = vpop.f32.mrb[0].mxu0
        %v649 = vadd.f32 0.0, %v648
        %650 = vmatprep.mubr.f32.mxu0 0.0
        %651 = vmatmul.mubr.f32.gmra.mrb[0].mxu0 %v357
        %v652 = vpop.f32.mrb[0].mxu0
        %v653 = vadd.f32 0.0, %v652
        %v654 = vpop.f32.mrb[0].mxu0
        %v655 = vadd.f32 0.0, %v654
        %656 = vmatprep.mubr.f32.mxu0 0.0
        %657 = vmatmul.mubr.f32.gmra.mrb[0].mxu0 %v360
        %v658 = vpop.f32.mrb[0].mxu0
        %v659 = vadd.f32 0.0, %v658
        %v660 = vpop.f32.mrb[0].mxu0
        %v661 = vadd.f32 0.0, %v660
        %662 = vmatprep.mubr.f32.mxu0 0.0
        %663 = vmatmul.mubr.f32.gmra.mrb[0].mxu0 %v363
        %v664 = vpop.f32.mrb[0].mxu0
        %v665 = vadd.f32 0.0, %v664
        %v666 = vpop.f32.mrb[0].mxu0
        %v667 = vadd.f32 0.0, %v666
        %668 = vmatprep.mubr.f32.mxu0 0.0
        %669 = vmatmul.mubr.f32.gmra.mrb[0].mxu0 %v366
        %v670 = vpop.f32.mrb[0].mxu0
        %v671 = vadd.f32 0.0, %v670
        %v672 = vpop.f32.mrb[0].mxu0
        %v673 = vadd.f32 0.0, %v672
        %674 = vmatprep.mubr.f32.mxu0 0.0
        %675 = vmatmul.mubr.f32.gmra.mrb[0].mxu0 %v369
        %v676 = vpop.f32.mrb[0].mxu0
        %v677 = vadd.f32 0.0, %v676
        %v678 = vpop.f32.mrb[0].mxu0
        %v679 = vadd.f32 0.0, %v678
        %680 = vmatprep.mubr.f32.mxu0 0.0
        %681 = vmatmul.mubr.f32.gmra.mrb[0].mxu0 %v372
        %v682 = vpop.f32.mrb[0].mxu0
        %v683 = vadd.f32 0.0, %v682
        %v684 = vpop.f32.mrb[0].mxu0
        %v685 = vadd.f32 0.0, %v684
        %686 = vmatprep.mubr.f32.mxu0 0.0
        %687 = vmatmul.mubr.f32.gmra.mrb[0].mxu0 %v375
        %v688 = vpop.f32.mrb[0].mxu0
        %v689 = vadd.f32 0.0, %v688
        %v690 = vpop.f32.mrb[0].mxu0
        %v691 = vadd.f32 0.0, %v690
        %692 = vmatprep.mubr.f32.mxu0 0.0
        %693 = vmatmul.mubr.f32.gmra.mrb[0].mxu0 %v378
        %v694 = vpop.f32.mrb[0].mxu0
        %v695 = vadd.f32 0.0, %v694
        %v696 = vpop.f32.mrb[0].mxu0
        %v697 = vadd.f32 0.0, %v696
        %698 = vmatprep.mubr.f32.mxu0 0.0
        %699 = vmatmul.mubr.f32.gmra.mrb[0].mxu0 %v381
        %v700 = vpop.f32.mrb[0].mxu0
        %v701 = vadd.f32 0.0, %v700
        %v702 = vpop.f32.mrb[0].mxu0
        %v703 = vadd.f32 0.0, %v702
        %704 = vmatprep.mubr.f32.mxu0 0.0
        %705 = vmatmul.mubr.f32.gmra.mrb[0].mxu0 %v384
        %v706 = vpop.f32.mrb[0].mxu0
        %v707 = vadd.f32 0.0, %v706
        %v708 = vpop.f32.mrb[0].mxu0
        %v709 = vadd.f32 0.0, %v708
        %710 = vmatprep.mubr.f32.mxu0 0.0
        %711 = vmatmul.mubr.f32.gmra.mrb[0].mxu0 %v387
        %v712 = vpop.f32.mrb[0].mxu0
        %v713 = vadd.f32 0.0, %v712
        %v714 = vpop.f32.mrb[0].mxu0
        %v715 = vadd.f32 0.0, %v714
        %716 = vmatprep.mubr.f32.mxu0 0.0
        %717 = vmatmul.mubr.f32.gmra.mrb[0].mxu0 %v390
        %v718 = vpop.f32.mrb[0].mxu0
        %v719 = vadd.f32 0.0, %v718
        %v720 = vpop.f32.mrb[0].mxu0
        %v721 = vadd.f32 0.0, %v720
        %722 = vmatprep.mubr.f32.mxu0 0.0
        %723 = vmatmul.mubr.f32.gmra.mrb[0].mxu0 %v393
        %v724 = vpop.f32.mrb[0].mxu0
        %v725 = vadd.f32 0.0, %v724
        %v726 = vpop.f32.mrb[0].mxu0
        %v727 = vadd.f32 0.0, %v726
        %728 = vmatprep.mubr.f32.mxu0 0.0
        %729 = vmatmul.mubr.f32.gmra.mrb[0].mxu0 %v396
        %v730 = vpop.f32.mrb[0].mxu0
        %v731 = vadd.f32 0.0, %v730
        %v732 = vpop.f32.mrb[0].mxu0
        %v733 = vadd.f32 0.0, %v732
        %734 = vmatprep.mubr.f32.mxu0 0.0
        %735 = vmatmul.mubr.f32.gmra.mrb[0].mxu0 %v399
        %v736 = vpop.f32.mrb[0].mxu0
        %v737 = vadd.f32 0.0, %v736
        %v738 = vpop.f32.mrb[0].mxu0
        %v739 = vadd.f32 0.0, %v738
        %740 = vmatprep.mubr.f32.mxu0 0.0
        %741 = vmatmul.mubr.f32.gmra.mrb[0].mxu0 %v402
        %v742 = vpop.f32.mrb[0].mxu0
        %v743 = vadd.f32 0.0, %v742
        %v744 = vpop.f32.mrb[0].mxu0
        %v745 = vadd.f32 0.0, %v744
        %746 = vmatprep.mubr.f32.mxu0 0.0
        %747 = vmatmul.mubr.f32.gmra.mrb[0].mxu0 %v405
        %v748 = vpop.f32.mrb[0].mxu0
        %v749 = vadd.f32 0.0, %v748
        %v750 = vpop.f32.mrb[0].mxu0
        %v751 = vadd.f32 0.0, %v750
        %752 = vmatprep.mubr.f32.mxu0 0.0
        %753 = vmatmul.mubr.f32.gmra.mrb[0].mxu0 %v408
        %v754 = vpop.f32.mrb[0].mxu0
        %v755 = vadd.f32 0.0, %v754
        %v756 = vpop.f32.mrb[0].mxu0
        %v757 = vadd.f32 0.0, %v756
        %758 = vmatprep.mubr.f32.mxu0 0.0
        %759 = vmatmul.mubr.f32.gmra.mrb[0].mxu0 %v411
        %v760 = vpop.f32.mrb[0].mxu0
        %v761 = vadd.f32 0.0, %v760
        %v762 = vpop.f32.mrb[0].mxu0
        %v763 = vadd.f32 0.0, %v762
        %764 = vmatprep.mubr.f32.mxu0 0.0
        %765 = vmatmul.mubr.f32.gmra.mrb[0].mxu0 %v414
        %v766 = vpop.f32.mrb[0].mxu0
        %v767 = vadd.f32 0.0, %v766
        %v768 = vpop.f32.mrb[0].mxu0
        %v769 = vadd.f32 0.0, %v768
        %770 = vmatprep.mubr.f32.mxu0 0.0
        %771 = vmatmul.mubr.f32.gmra.mrb[0].mxu0 %v417
        %v772 = vpop.f32.mrb[0].mxu0
        %v773 = vadd.f32 0.0, %v772
        %v774 = vpop.f32.mrb[0].mxu0
        %v775 = vadd.f32 0.0, %v774
        %776 = vdwg.mxu0
        %v777 = vmax.f32 %v491, %v503
        %v778 = vmax.f32 %v497, %v509
        %v779 = vmax.f32 %v777, %v778
        %v780 = vrot.slane %v779, 4
        %v781 = vmax.f32 %v779, %v780
        %v782 = vrot.slane %v781, 2
        %v783 = vmax.f32 %v781, %v782
        %v784 = vrot.slane %v783, 1
        %v785 = vmax.f32 %v783, %v784
        %v786 = vmax.f32 %v493, %v505
        %v787 = vmax.f32 %v499, %v511
        %v788 = vmax.f32 %v786, %v787
        %v789 = vrot.slane %v788, 4
        %v790 = vmax.f32 %v788, %v789
        %v791 = vrot.slane %v790, 2
        %v792 = vmax.f32 %v790, %v791
        %v793 = vrot.slane %v792, 1
        %v794 = vmax.f32 %v792, %v793
        %v795 = vsub.f32 %v491, %v785
        %v796 = vsub.f32 %v493, %v794
        %v797 = vsub.f32 %v497, %v785
        %v798 = vsub.f32 %v499, %v794
        %v799 = vsub.f32 %v503, %v785
        %v800 = vsub.f32 %v505, %v794
        %v801 = vsub.f32 %v509, %v785
        %v802 = vsub.f32 %v511, %v794
        %v803 = vmul.f32 %v795, 1.442695
        %v804 = vpow.pop %v803
        %v805 = vmul.f32 %v796, 1.442695
        %v806 = vpow.pop %v805
        %v807 = vmul.f32 %v797, 1.442695
        %v808 = vpow.pop %v807
        %v809 = vmul.f32 %v798, 1.442695
        %v810 = vpow.pop %v809
        %v811 = vmul.f32 %v799, 1.442695
        %v812 = vpow.pop %v811
        %v813 = vmul.f32 %v800, 1.442695
        %v814 = vpow.pop %v813
        %v815 = vmul.f32 %v801, 1.442695
        %v816 = vpow.pop %v815
        %v817 = vmul.f32 %v802, 1.442695
        %v818 = vpow.pop %v817
        %v819 = vadd.f32 %v804, %v808
        %v820 = vadd.f32 %v819, %v812
        %v821 = vadd.f32 %v820, %v816
        %v822 = vrot.slane %v821, 4
        %v823 = vadd.f32 %v821, %v822
        %v824 = vrot.slane %v823, 2
        %v825 = vadd.f32 %v823, %v824
        %v826 = vrot.slane %v825, 1
        %v827 = vadd.f32 %v825, %v826
        %v828 = vadd.f32 %v806, %v810
        %v829 = vadd.f32 %v828, %v814
        %v830 = vadd.f32 %v829, %v818
        %v831 = vrot.slane %v830, 4
        %v832 = vadd.f32 %v830, %v831
        %v833 = vrot.slane %v832, 2
        %v834 = vadd.f32 %v832, %v833
        %v835 = vrot.slane %v834, 1
        %v836 = vadd.f32 %v834, %v835
        %v837 = vrcp.pop %v827
        %v838 = vmul.f32 0.17677669, %v837
        %v839 = vrcp.pop %v836
        %v840 = vmul.f32 0.17677669, %v839
        %v841 = vmul.f32 %v804, %v838
        %v842 = vmul.f32 %v806, %v840
        %v843 = vmul.f32 %v808, %v838
        %v844 = vmul.f32 %v810, %v840
        %v845 = vmul.f32 %v812, %v838
        %v846 = vmul.f32 %v814, %v840
        %v847 = vmul.f32 %v816, %v838
        %v848 = vmul.f32 %v818, %v840
        %v849 = vmax.f32 %v587, %v589
        %850 = vmax.xlane.f32.xlu0 %v849
        %v851 = vpop.xlane.xlu0 %850
        %v852 = vmax.f32 %v593, %v595
        %853 = vmax.xlane.f32.xlu0 %v852
        %v854 = vpop.xlane.xlu0 %853
        %v855 = vmax.f32 %v599, %v601
        %856 = vmax.xlane.f32.xlu0 %v855
        %v857 = vpop.xlane.xlu0 %856
        %v858 = vmax.f32 %v605, %v607
        %859 = vmax.xlane.f32.xlu0 %v858
        %v860 = vpop.xlane.xlu0 %859
        %v861 = vsub.f32 %v587, %v851
        %v862 = vsub.f32 %v589, %v851
        %v863 = vsub.f32 %v593, %v854
        %v864 = vsub.f32 %v595, %v854
        %v865 = vsub.f32 %v599, %v857
        %v866 = vsub.f32 %v601, %v857
        %v867 = vsub.f32 %v605, %v860
        %v868 = vsub.f32 %v607, %v860
        %v869 = vmul.f32 %v861, 1.442695
        %v870 = vpow.pop %v869
        %v871 = vmul.f32 %v862, 1.442695
        %v872 = vpow.pop %v871
        %v873 = vmul.f32 %v863, 1.442695
        %v874 = vpow.pop %v873
        %v875 = vmul.f32 %v864, 1.442695
        %v876 = vpow.pop %v875
        %v877 = vmul.f32 %v865, 1.442695
        %v878 = vpow.pop %v877
        %v879 = vmul.f32 %v866, 1.442695
        %v880 = vpow.pop %v879
        %v881 = vmul.f32 %v867, 1.442695
        %v882 = vpow.pop %v881
        %v883 = vmul.f32 %v868, 1.442695
        %v884 = vpow.pop %v883
        %v885 = vadd.f32 %v870, %v872
        %886 = vadd.xlane.f32.xlu0 %v885
        %v887 = vpop.xlane.xlu0 %886
        %v888 = vadd.f32 %v874, %v876
        %889 = vadd.xlane.f32.xlu0 %v888
        %v890 = vpop.xlane.xlu0 %889
        %v891 = vadd.f32 %v878, %v880
        %892 = vadd.xlane.f32.xlu0 %v891
        %v893 = vpop.xlane.xlu0 %892
        %v894 = vadd.f32 %v882, %v884
        %895 = vadd.xlane.f32.xlu0 %v894
        %v896 = vpop.xlane.xlu0 %895
        %v897 = vrcp.pop %v887
        %v898 = vmul.f32 %v870, %v897
        %v899 = vmul.f32 %v872, %v897
        %v900 = vrcp.pop %v890
        %v901 = vmul.f32 %v874, %v900
        %v902 = vmul.f32 %v876, %v900
        %v903 = vrcp.pop %v893
        %v904 = vmul.f32 %v878, %v903
        %v905 = vmul.f32 %v880, %v903
        %v906 = vrcp.pop %v896
        %v907 = vmul.f32 %v882, %v906
        %v908 = vmul.f32 %v884, %v906
        %v909 = vmul.f32 %v683, 0.00390625
        %v910 = vmul.f32 %v685, 0.00390625
        %v911 = vmul.f32 %v689, 0.00390625
        %v912 = vmul.f32 %v691, 0.00390625
        %v913 = vmul.f32 %v695, 0.00390625
        %v914 = vmul.f32 %v697, 0.00390625
        %v915 = vmul.f32 %v701, 0.00390625
        %v916 = vmul.f32 %v703, 0.00390625
        %917 = vmatprep.subr.mxu0 %v899
        %918 = vmatpush1.xpose.msra.mxu0 %v898
        %919 = vmatprep.subr.mxu0 %v902
        %920 = vmatpush1.xpose.msra.mxu0 %v901
        %921 = vmatprep.subr.mxu0 %v905
        %922 = vmatpush1.xpose.msra.mxu0 %v904
        %923 = vmatprep.subr.mxu0 %v908
        %924 = vmatpush1.xpose.msra.mxu0 %v907
        %925 = vmatprep.subr.mxu0 0.0
        %926 = vmatpush1.xpose.msra.mxu0 0.0
        %927 = vmatprep.subr.mxu0 0.0
        %928 = vmatpush1.xpose.msra.mxu0 0.0
        %929 = vmatprep.subr.mxu0 0.0
        %930 = vmatpush1.xpose.msra.mxu0 0.0
        %931 = vmatprep.subr.mxu0 0.0
        %932 = vmatpush1.xpose.msra.mxu0 0.0
        %933 = vmatprep.subr.mxu0 0.0
        %934 = vmatpush1.xpose.msra.mxu0 0.0
        %935 = vmatprep.subr.mxu0 0.0
        %936 = vmatpush1.xpose.msra.mxu0 0.0
        %937 = vmatprep.subr.mxu0 0.0
        %938 = vmatpush1.xpose.msra.mxu0 0.0
        %939 = vmatprep.subr.mxu0 0.0
        %940 = vmatpush1.xpose.msra.mxu0 0.0
        %941 = vmatprep.subr.mxu0 0.0
        %942 = vmatpush1.xpose.msra.mxu0 0.0
        %943 = vmatprep.subr.mxu0 0.0
        %944 = vmatpush1.xpose.msra.mxu0 0.0
        %945 = vmatprep.subr.mxu0 0.0
        %946 = vmatpush1.xpose.msra.mxu0 0.0
        %947 = vmatprep.subr.mxu0 0.0
        %948 = vmatpush1.xpose.msra.mxu0 0.0
        %949 = vmatprep.subr.mxu0 0.0
        %950 = vmatpush1.xpose.msra.mxu0 0.0
        %951 = vmatprep.subr.mxu0 0.0
        %952 = vmatpush1.xpose.msra.mxu0 0.0
        %953 = vmatprep.subr.mxu0 0.0
        %954 = vmatpush1.xpose.msra.mxu0 0.0
        %955 = vmatprep.subr.mxu0 0.0
        %956 = vmatpush1.xpose.msra.mxu0 0.0
        %957 = vmatprep.subr.mxu0 0.0
        %958 = vmatpush1.xpose.msra.mxu0 0.0
        %959 = vmatprep.subr.mxu0 0.0
        %960 = vmatpush1.xpose.msra.mxu0 0.0
        %961 = vmatprep.subr.mxu0 0.0
        %962 = vmatpush1.xpose.msra.mxu0 0.0
        %963 = vmatprep.subr.mxu0 0.0
        %964 = vmatpush1.xpose.msra.mxu0 0.0
        %965 = vmatprep.subr.mxu0 0.0
        %966 = vmatpush1.xpose.msra.mxu0 0.0
        %967 = vmatprep.subr.mxu0 0.0
        %968 = vmatpush1.xpose.msra.mxu0 0.0
        %969 = vmatprep.subr.mxu0 0.0
        %970 = vmatpush1.xpose.msra.mxu0 0.0
        %971 = vmatprep.subr.mxu0 0.0
        %972 = vmatpush1.xpose.msra.mxu0 0.0
        %973 = vmatprep.subr.mxu0 0.0
        %974 = vmatpush1.xpose.msra.mxu0 0.0
        %975 = vmatprep.subr.mxu0 0.0
        %976 = vmatpush1.xpose.msra.mxu0 0.0
        %977 = vmatprep.subr.mxu0 0.0
        %978 = vmatpush1.xpose.msra.mxu0 0.0
        %979 = vmatprep.subr.mxu0 0.0
        %980 = vmatpush1.xpose.msra.mxu0 0.0
        %981 = vmatprep.mubr.f32.mxu0 %v910
        %982 = vmatmul.mubr.f32.gmra.mrb[0].mxu0 %v909
        %v983 = vpop.f32.mrb[0].mxu0
        %v984 = vadd.f32 0.0, %v983
        %v985 = vpop.f32.mrb[0].mxu0
        %986 = vmatprep.mubr.f32.mxu0 %v912
        %987 = vmatmul.mubr.f32.gmra.mrb[0].mxu0 %v911
        %v988 = vpop.f32.mrb[0].mxu0
        %v989 = vadd.f32 0.0, %v988
        %v990 = vpop.f32.mrb[0].mxu0
        %991 = vmatprep.mubr.f32.mxu0 %v914
        %992 = vmatmul.mubr.f32.gmra.mrb[0].mxu0 %v913
        %v993 = vpop.f32.mrb[0].mxu0
        %v994 = vadd.f32 0.0, %v993
        %v995 = vpop.f32.mrb[0].mxu0
        %996 = vmatprep.mubr.f32.mxu0 %v916
        %997 = vmatmul.mubr.f32.gmra.mrb[0].mxu0 %v915
        %v998 = vpop.f32.mrb[0].mxu0
        %v999 = vadd.f32 0.0, %v998
        %v1000 = vpop.f32.mrb[0].mxu0
        %1001 = vdwg.mxu0
        %vm1002 = vcmask 261120
        %v1004 = vsel %vm1002, %v984, 0
        %v1007 = vsel %vm1002, %v989, 0
        %v1010 = vsel %vm1002, %v994, 0
        %v1013 = vsel %vm1002, %v999, 0
        %1015 = vmatprep.subr.mxu0 %v842
        %1016 = vmatpush1.msra.mxu0 %v841
        %1017 = vmatprep.subr.mxu0 %v844
        %1018 = vmatpush1.msra.mxu0 %v843
        %1019 = vmatprep.subr.mxu0 %v846
        %1020 = vmatpush1.msra.mxu0 %v845
        %1021 = vmatprep.subr.mxu0 %v848
        %1022 = vmatpush1.msra.mxu0 %v847
        %1023 = vmatprep.subr.mxu0 0.0
        %1024 = vmatpush1.msra.mxu0 0.0
        %1025 = vmatprep.subr.mxu0 0.0
        %1026 = vmatpush1.msra.mxu0 0.0
        %1027 = vmatprep.subr.mxu0 0.0
        %1028 = vmatpush1.msra.mxu0 0.0
        %1029 = vmatprep.subr.mxu0 0.0
        %1030 = vmatpush1.msra.mxu0 0.0
        %1031 = vmatprep.subr.mxu0 0.0
        %1032 = vmatpush1.msra.mxu0 0.0
        %1033 = vmatprep.subr.mxu0 0.0
        %1034 = vmatpush1.msra.mxu0 0.0
        %1035 = vmatprep.subr.mxu0 0.0
        %1036 = vmatpush1.msra.mxu0 0.0
        %1037 = vmatprep.subr.mxu0 0.0
        %1038 = vmatpush1.msra.mxu0 0.0
        %1039 = vmatprep.subr.mxu0 0.0
        %1040 = vmatpush1.msra.mxu0 0.0
        %1041 = vmatprep.subr.mxu0 0.0
        %1042 = vmatpush1.msra.mxu0 0.0
        %1043 = vmatprep.subr.mxu0 0.0
        %1044 = vmatpush1.msra.mxu0 0.0
        %1045 = vmatprep.subr.mxu0 0.0
        %1046 = vmatpush1.msra.mxu0 0.0
        %1047 = vmatprep.subr.mxu0 0.0
        %1048 = vmatpush1.msra.mxu0 0.0
        %1049 = vmatprep.subr.mxu0 0.0
        %1050 = vmatpush1.msra.mxu0 0.0
        %1051 = vmatprep.subr.mxu0 0.0
        %1052 = vmatpush1.msra.mxu0 0.0
        %1053 = vmatprep.subr.mxu0 0.0
        %1054 = vmatpush1.msra.mxu0 0.0
        %1055 = vmatprep.subr.mxu0 0.0
        %1056 = vmatpush1.msra.mxu0 0.0
        %1057 = vmatprep.subr.mxu0 0.0
        %1058 = vmatpush1.msra.mxu0 0.0
        %1059 = vmatprep.subr.mxu0 0.0
        %1060 = vmatpush1.msra.mxu0 0.0
        %1061 = vmatprep.subr.mxu0 0.0
        %1062 = vmatpush1.msra.mxu0 0.0
        %1063 = vmatprep.subr.mxu0 0.0
        %1064 = vmatpush1.msra.mxu0 0.0
        %1065 = vmatprep.subr.mxu0 0.0
        %1066 = vmatpush1.msra.mxu0 0.0
        %1067 = vmatprep.subr.mxu0 0.0
        %1068 = vmatpush1.msra.mxu0 0.0
        %1069 = vmatprep.subr.mxu0 0.0
        %1070 = vmatpush1.msra.mxu0 0.0
        %1071 = vmatprep.subr.mxu0 0.0
        %1072 = vmatpush1.msra.mxu0 0.0
        %1073 = vmatprep.subr.mxu0 0.0
        %1074 = vmatpush1.msra.mxu0 0.0
        %1075 = vmatprep.subr.mxu0 0.0
        %1076 = vmatpush1.msra.mxu0 0.0
        %1077 = vmatprep.subr.mxu0 0.0
        %1078 = vmatpush1.msra.mxu0 0.0
        %1079 = vmatprep.mubr.f32.mxu0 0.0
        %1080 = vmatmul.mubr.f32.gmra.mrb[0].mxu0 %v1004
        %v1081 = vpop.f32.mrb[0].mxu0
        %v1082 = vadd.f32 0.0, %v1081
        %v1083 = vpop.f32.mrb[0].mxu0
        %v1084 = vadd.f32 0.0, %v1083
        %1085 = vmatprep.mubr.f32.mxu0 0.0
        %1086 = vmatmul.mubr.f32.gmra.mrb[0].mxu0 %v1007
        %v1087 = vpop.f32.mrb[0].mxu0
        %v1088 = vadd.f32 0.0, %v1087
        %v1089 = vpop.f32.mrb[0].mxu0
        %v1090 = vadd.f32 0.0, %v1089
        %1091 = vmatprep.mubr.f32.mxu0 0.0
        %1092 = vmatmul.mubr.f32.gmra.mrb[0].mxu0 %v1010
        %v1093 = vpop.f32.mrb[0].mxu0
        %v1094 = vadd.f32 0.0, %v1093
        %v1095 = vpop.f32.mrb[0].mxu0
        %v1096 = vadd.f32 0.0, %v1095
        %1097 = vmatprep.mubr.f32.mxu0 0.0
        %1098 = vmatmul.mubr.f32.gmra.mrb[0].mxu0 %v1013
        %v1099 = vpop.f32.mrb[0].mxu0
        %v1100 = vadd.f32 0.0, %v1099
        %v1101 = vpop.f32.mrb[0].mxu0
        %v1102 = vadd.f32 0.0, %v1101
        %1103 = vdwg.mxu0
        %v1104 = vmax.f32 %v515, %v527
        %v1105 = vmax.f32 %v521, %v533
        %v1106 = vmax.f32 %v1104, %v1105
        %v1107 = vrot.slane %v1106, 4
        %v1108 = vmax.f32 %v1106, %v1107
        %v1109 = vrot.slane %v1108, 2
        %v1110 = vmax.f32 %v1108, %v1109
        %v1111 = vrot.slane %v1110, 1
        %v1112 = vmax.f32 %v1110, %v1111
        %v1113 = vmax.f32 %v517, %v529
        %v1114 = vmax.f32 %v523, %v535
        %v1115 = vmax.f32 %v1113, %v1114
        %v1116 = vrot.slane %v1115, 4
        %v1117 = vmax.f32 %v1115, %v1116
        %v1118 = vrot.slane %v1117, 2
        %v1119 = vmax.f32 %v1117, %v1118
        %v1120 = vrot.slane %v1119, 1
        %v1121 = vmax.f32 %v1119, %v1120
        %v1122 = vsub.f32 %v515, %v1112
        %v1123 = vsub.f32 %v517, %v1121
        %v1124 = vsub.f32 %v521, %v1112
        %v1125 = vsub.f32 %v523, %v1121
        %v1126 = vsub.f32 %v527, %v1112
        %v1127 = vsub.f32 %v529, %v1121
        %v1128 = vsub.f32 %v533, %v1112
        %v1129 = vsub.f32 %v535, %v1121
        %v1130 = vmul.f32 %v1122, 1.442695
        %v1131 = vpow.pop %v1130
        %v1132 = vmul.f32 %v1123, 1.442695
        %v1133 = vpow.pop %v1132
        %v1134 = vmul.f32 %v1124, 1.442695
        %v1135 = vpow.pop %v1134
        %v1136 = vmul.f32 %v1125, 1.442695
        %v1137 = vpow.pop %v1136
        %v1138 = vmul.f32 %v1126, 1.442695
        %v1139 = vpow.pop %v1138
        %v1140 = vmul.f32 %v1127, 1.442695
        %v1141 = vpow.pop %v1140
        %v1142 = vmul.f32 %v1128, 1.442695
        %v1143 = vpow.pop %v1142
        %v1144 = vmul.f32 %v1129, 1.442695
        %v1145 = vpow.pop %v1144
        %v1146 = vadd.f32 %v1131, %v1135
        %v1147 = vadd.f32 %v1146, %v1139
        %v1148 = vadd.f32 %v1147, %v1143
        %v1149 = vrot.slane %v1148, 4
        %v1150 = vadd.f32 %v1148, %v1149
        %v1151 = vrot.slane %v1150, 2
        %v1152 = vadd.f32 %v1150, %v1151
        %v1153 = vrot.slane %v1152, 1
        %v1154 = vadd.f32 %v1152, %v1153
        %v1155 = vadd.f32 %v1133, %v1137
        %v1156 = vadd.f32 %v1155, %v1141
        %v1157 = vadd.f32 %v1156, %v1145
        %v1158 = vrot.slane %v1157, 4
        %v1159 = vadd.f32 %v1157, %v1158
        %v1160 = vrot.slane %v1159, 2
        %v1161 = vadd.f32 %v1159, %v1160
        %v1162 = vrot.slane %v1161, 1
        %v1163 = vadd.f32 %v1161, %v1162
        %v1164 = vrcp.pop %v1154
        %v1165 = vmul.f32 0.17677669, %v1164
        %v1166 = vrcp.pop %v1163
        %v1167 = vmul.f32 0.17677669, %v1166
        %v1168 = vmul.f32 %v1131, %v1165
        %v1169 = vmul.f32 %v1133, %v1167
        %v1170 = vmul.f32 %v1135, %v1165
        %v1171 = vmul.f32 %v1137, %v1167
        %v1172 = vmul.f32 %v1139, %v1165
        %v1173 = vmul.f32 %v1141, %v1167
        %v1174 = vmul.f32 %v1143, %v1165
        %v1175 = vmul.f32 %v1145, %v1167
        %v1176 = vmax.f32 %v611, %v613
        %1177 = vmax.xlane.f32.xlu0 %v1176
        %v1178 = vpop.xlane.xlu0 %1177
        %v1179 = vmax.f32 %v617, %v619
        %1180 = vmax.xlane.f32.xlu0 %v1179
        %v1181 = vpop.xlane.xlu0 %1180
        %v1182 = vmax.f32 %v623, %v625
        %1183 = vmax.xlane.f32.xlu0 %v1182
        %v1184 = vpop.xlane.xlu0 %1183
        %v1185 = vmax.f32 %v629, %v631
        %1186 = vmax.xlane.f32.xlu0 %v1185
        %v1187 = vpop.xlane.xlu0 %1186
        %v1188 = vsub.f32 %v611, %v1178
        %v1189 = vsub.f32 %v613, %v1178
        %v1190 = vsub.f32 %v617, %v1181
        %v1191 = vsub.f32 %v619, %v1181
        %v1192 = vsub.f32 %v623, %v1184
        %v1193 = vsub.f32 %v625, %v1184
        %v1194 = vsub.f32 %v629, %v1187
        %v1195 = vsub.f32 %v631, %v1187
        %v1196 = vmul.f32 %v1188, 1.442695
        %v1197 = vpow.pop %v1196
        %v1198 = vmul.f32 %v1189, 1.442695
        %v1199 = vpow.pop %v1198
        %v1200 = vmul.f32 %v1190, 1.442695
        %v1201 = vpow.pop %v1200
        %v1202 = vmul.f32 %v1191, 1.442695
        %v1203 = vpow.pop %v1202
        %v1204 = vmul.f32 %v1192, 1.442695
        %v1205 = vpow.pop %v1204
        %v1206 = vmul.f32 %v1193, 1.442695
        %v1207 = vpow.pop %v1206
        %v1208 = vmul.f32 %v1194, 1.442695
        %v1209 = vpow.pop %v1208
        %v1210 = vmul.f32 %v1195, 1.442695
        %v1211 = vpow.pop %v1210
        %v1212 = vadd.f32 %v1197, %v1199
        %1213 = vadd.xlane.f32.xlu0 %v1212
        %v1214 = vpop.xlane.xlu0 %1213
        %v1215 = vadd.f32 %v1201, %v1203
        %1216 = vadd.xlane.f32.xlu0 %v1215
        %v1217 = vpop.xlane.xlu0 %1216
        %v1218 = vadd.f32 %v1205, %v1207
        %1219 = vadd.xlane.f32.xlu0 %v1218
        %v1220 = vpop.xlane.xlu0 %1219
        %v1221 = vadd.f32 %v1209, %v1211
        %1222 = vadd.xlane.f32.xlu0 %v1221
        %v1223 = vpop.xlane.xlu0 %1222
        %v1224 = vrcp.pop %v1214
        %v1225 = vmul.f32 %v1197, %v1224
        %v1226 = vmul.f32 %v1199, %v1224
        %v1227 = vrcp.pop %v1217
        %v1228 = vmul.f32 %v1201, %v1227
        %v1229 = vmul.f32 %v1203, %v1227
        %v1230 = vrcp.pop %v1220
        %v1231 = vmul.f32 %v1205, %v1230
        %v1232 = vmul.f32 %v1207, %v1230
        %v1233 = vrcp.pop %v1223
        %v1234 = vmul.f32 %v1209, %v1233
        %v1235 = vmul.f32 %v1211, %v1233
        %v1236 = vmul.f32 %v707, 0.00390625
        %v1237 = vmul.f32 %v709, 0.00390625
        %v1238 = vmul.f32 %v713, 0.00390625
        %v1239 = vmul.f32 %v715, 0.00390625
        %v1240 = vmul.f32 %v719, 0.00390625
        %v1241 = vmul.f32 %v721, 0.00390625
        %v1242 = vmul.f32 %v725, 0.00390625
        %v1243 = vmul.f32 %v727, 0.00390625
        %1244 = vmatprep.subr.mxu0 %v1226
        %1245 = vmatpush1.xpose.msra.mxu0 %v1225
        %1246 = vmatprep.subr.mxu0 %v1229
        %1247 = vmatpush1.xpose.msra.mxu0 %v1228
        %1248 = vmatprep.subr.mxu0 %v1232
        %1249 = vmatpush1.xpose.msra.mxu0 %v1231
        %1250 = vmatprep.subr.mxu0 %v1235
        %1251 = vmatpush1.xpose.msra.mxu0 %v1234
        %1252 = vmatprep.subr.mxu0 0.0
        %1253 = vmatpush1.xpose.msra.mxu0 0.0
        %1254 = vmatprep.subr.mxu0 0.0
        %1255 = vmatpush1.xpose.msra.mxu0 0.0
        %1256 = vmatprep.subr.mxu0 0.0
        %1257 = vmatpush1.xpose.msra.mxu0 0.0
        %1258 = vmatprep.subr.mxu0 0.0
        %1259 = vmatpush1.xpose.msra.mxu0 0.0
        %1260 = vmatprep.subr.mxu0 0.0
        %1261 = vmatpush1.xpose.msra.mxu0 0.0
        %1262 = vmatprep.subr.mxu0 0.0
        %1263 = vmatpush1.xpose.msra.mxu0 0.0
        %1264 = vmatprep.subr.mxu0 0.0
        %1265 = vmatpush1.xpose.msra.mxu0 0.0
        %1266 = vmatprep.subr.mxu0 0.0
        %1267 = vmatpush1.xpose.msra.mxu0 0.0
        %1268 = vmatprep.subr.mxu0 0.0
        %1269 = vmatpush1.xpose.msra.mxu0 0.0
        %1270 = vmatprep.subr.mxu0 0.0
        %1271 = vmatpush1.xpose.msra.mxu0 0.0
        %1272 = vmatprep.subr.mxu0 0.0
        %1273 = vmatpush1.xpose.msra.mxu0 0.0
        %1274 = vmatprep.subr.mxu0 0.0
        %1275 = vmatpush1.xpose.msra.mxu0 0.0
        %1276 = vmatprep.subr.mxu0 0.0
        %1277 = vmatpush1.xpose.msra.mxu0 0.0
        %1278 = vmatprep.subr.mxu0 0.0
        %1279 = vmatpush1.xpose.msra.mxu0 0.0
        %1280 = vmatprep.subr.mxu0 0.0
        %1281 = vmatpush1.xpose.msra.mxu0 0.0
        %1282 = vmatprep.subr.mxu0 0.0
        %1283 = vmatpush1.xpose.msra.mxu0 0.0
        %1284 = vmatprep.subr.mxu0 0.0
        %1285 = vmatpush1.xpose.msra.mxu0 0.0
        %1286 = vmatprep.subr.mxu0 0.0
        %1287 = vmatpush1.xpose.msra.mxu0 0.0
        %1288 = vmatprep.subr.mxu0 0.0
        %1289 = vmatpush1.xpose.msra.mxu0 0.0
        %1290 = vmatprep.subr.mxu0 0.0
        %1291 = vmatpush1.xpose.msra.mxu0 0.0
        %1292 = vmatprep.subr.mxu0 0.0
        %1293 = vmatpush1.xpose.msra.mxu0 0.0
        %1294 = vmatprep.subr.mxu0 0.0
        %1295 = vmatpush1.xpose.msra.mxu0 0.0
        %1296 = vmatprep.subr.mxu0 0.0
        %1297 = vmatpush1.xpose.msra.mxu0 0.0
        %1298 = vmatprep.subr.mxu0 0.0
        %1299 = vmatpush1.xpose.msra.mxu0 0.0
        %1300 = vmatprep.subr.mxu0 0.0
        %1301 = vmatpush1.xpose.msra.mxu0 0.0
        %1302 = vmatprep.subr.mxu0 0.0
        %1303 = vmatpush1.xpose.msra.mxu0 0.0
        %1304 = vmatprep.subr.mxu0 0.0
        %1305 = vmatpush1.xpose.msra.mxu0 0.0
        %1306 = vmatprep.subr.mxu0 0.0
        %1307 = vmatpush1.xpose.msra.mxu0 0.0
        %1308 = vmatprep.mubr.f32.mxu0 %v1237
        %1309 = vmatmul.mubr.f32.gmra.mrb[0].mxu0 %v1236
        %v1310 = vpop.f32.mrb[0].mxu0
        %v1311 = vadd.f32 0.0, %v1310
        %v1312 = vpop.f32.mrb[0].mxu0
        %1313 = vmatprep.mubr.f32.mxu0 %v1239
        %1314 = vmatmul.mubr.f32.gmra.mrb[0].mxu0 %v1238
        %v1315 = vpop.f32.mrb[0].mxu0
        %v1316 = vadd.f32 0.0, %v1315
        %v1317 = vpop.f32.mrb[0].mxu0
        %1318 = vmatprep.mubr.f32.mxu0 %v1241
        %1319 = vmatmul.mubr.f32.gmra.mrb[0].mxu0 %v1240
        %v1320 = vpop.f32.mrb[0].mxu0
        %v1321 = vadd.f32 0.0, %v1320
        %v1322 = vpop.f32.mrb[0].mxu0
        %1323 = vmatprep.mubr.f32.mxu0 %v1243
        %1324 = vmatmul.mubr.f32.gmra.mrb[0].mxu0 %v1242
        %v1325 = vpop.f32.mrb[0].mxu0
        %v1326 = vadd.f32 0.0, %v1325
        %v1327 = vpop.f32.mrb[0].mxu0
        %1328 = vdwg.mxu0
        %v1330 = vsel %vm1002, %v1311, 0
        %v1333 = vsel %vm1002, %v1316, 0
        %v1336 = vsel %vm1002, %v1321, 0
        %v1339 = vsel %vm1002, %v1326, 0
        %1341 = vmatprep.subr.mxu0 %v1169
        %1342 = vmatpush1.msra.mxu0 %v1168
        %1343 = vmatprep.subr.mxu0 %v1171
        %1344 = vmatpush1.msra.mxu0 %v1170
        %1345 = vmatprep.subr.mxu0 %v1173
        %1346 = vmatpush1.msra.mxu0 %v1172
        %1347 = vmatprep.subr.mxu0 %v1175
        %1348 = vmatpush1.msra.mxu0 %v1174
        %1349 = vmatprep.subr.mxu0 0.0
        %1350 = vmatpush1.msra.mxu0 0.0
        %1351 = vmatprep.subr.mxu0 0.0
        %1352 = vmatpush1.msra.mxu0 0.0
        %1353 = vmatprep.subr.mxu0 0.0
        %1354 = vmatpush1.msra.mxu0 0.0
        %1355 = vmatprep.subr.mxu0 0.0
        %1356 = vmatpush1.msra.mxu0 0.0
        %1357 = vmatprep.subr.mxu0 0.0
        %1358 = vmatpush1.msra.mxu0 0.0
        %1359 = vmatprep.subr.mxu0 0.0
        %1360 = vmatpush1.msra.mxu0 0.0
        %1361 = vmatprep.subr.mxu0 0.0
        %1362 = vmatpush1.msra.mxu0 0.0
        %1363 = vmatprep.subr.mxu0 0.0
        %1364 = vmatpush1.msra.mxu0 0.0
        %1365 = vmatprep.subr.mxu0 0.0
        %1366 = vmatpush1.msra.mxu0 0.0
        %1367 = vmatprep.subr.mxu0 0.0
        %1368 = vmatpush1.msra.mxu0 0.0
        %1369 = vmatprep.subr.mxu0 0.0
        %1370 = vmatpush1.msra.mxu0 0.0
        %1371 = vmatprep.subr.mxu0 0.0
        %1372 = vmatpush1.msra.mxu0 0.0
        %1373 = vmatprep.subr.mxu0 0.0
        %1374 = vmatpush1.msra.mxu0 0.0
        %1375 = vmatprep.subr.mxu0 0.0
        %1376 = vmatpush1.msra.mxu0 0.0
        %1377 = vmatprep.subr.mxu0 0.0
        %1378 = vmatpush1.msra.mxu0 0.0
        %1379 = vmatprep.subr.mxu0 0.0
        %1380 = vmatpush1.msra.mxu0 0.0
        %1381 = vmatprep.subr.mxu0 0.0
        %1382 = vmatpush1.msra.mxu0 0.0
        %1383 = vmatprep.subr.mxu0 0.0
        %1384 = vmatpush1.msra.mxu0 0.0
        %1385 = vmatprep.subr.mxu0 0.0
        %1386 = vmatpush1.msra.mxu0 0.0
        %1387 = vmatprep.subr.mxu0 0.0
        %1388 = vmatpush1.msra.mxu0 0.0
        %1389 = vmatprep.subr.mxu0 0.0
        %1390 = vmatpush1.msra.mxu0 0.0
        %1391 = vmatprep.subr.mxu0 0.0
        %1392 = vmatpush1.msra.mxu0 0.0
        %1393 = vmatprep.subr.mxu0 0.0
        %1394 = vmatpush1.msra.mxu0 0.0
        %1395 = vmatprep.subr.mxu0 0.0
        %1396 = vmatpush1.msra.mxu0 0.0
        %1397 = vmatprep.subr.mxu0 0.0
        %1398 = vmatpush1.msra.mxu0 0.0
        %1399 = vmatprep.subr.mxu0 0.0
        %1400 = vmatpush1.msra.mxu0 0.0
        %1401 = vmatprep.subr.mxu0 0.0
        %1402 = vmatpush1.msra.mxu0 0.0
        %1403 = vmatprep.subr.mxu0 0.0
        %1404 = vmatpush1.msra.mxu0 0.0
        %1405 = vmatprep.mubr.f32.mxu0 0.0
        %1406 = vmatmul.mubr.f32.gmra.mrb[0].mxu0 %v1330
        %v1407 = vpop.f32.mrb[0].mxu0
        %v1408 = vadd.f32 0.0, %v1407
        %v1409 = vpop.f32.mrb[0].mxu0
        %v1410 = vadd.f32 0.0, %v1409
        %1411 = vmatprep.mubr.f32.mxu0 0.0
        %1412 = vmatmul.mubr.f32.gmra.mrb[0].mxu0 %v1333
        %v1413 = vpop.f32.mrb[0].mxu0
        %v1414 = vadd.f32 0.0, %v1413
        %v1415 = vpop.f32.mrb[0].mxu0
        %v1416 = vadd.f32 0.0, %v1415
        %1417 = vmatprep.mubr.f32.mxu0 0.0
        %1418 = vmatmul.mubr.f32.gmra.mrb[0].mxu0 %v1336
        %v1419 = vpop.f32.mrb[0].mxu0
        %v1420 = vadd.f32 0.0, %v1419
        %v1421 = vpop.f32.mrb[0].mxu0
        %v1422 = vadd.f32 0.0, %v1421
        %1423 = vmatprep.mubr.f32.mxu0 0.0
        %1424 = vmatmul.mubr.f32.gmra.mrb[0].mxu0 %v1339
        %v1425 = vpop.f32.mrb[0].mxu0
        %v1426 = vadd.f32 0.0, %v1425
        %v1427 = vpop.f32.mrb[0].mxu0
        %v1428 = vadd.f32 0.0, %v1427
        %1429 = vdwg.mxu0
        %v1430 = vmax.f32 %v539, %v551
        %v1431 = vmax.f32 %v545, %v557
        %v1432 = vmax.f32 %v1430, %v1431
        %v1433 = vrot.slane %v1432, 4
        %v1434 = vmax.f32 %v1432, %v1433
        %v1435 = vrot.slane %v1434, 2
        %v1436 = vmax.f32 %v1434, %v1435
        %v1437 = vrot.slane %v1436, 1
        %v1438 = vmax.f32 %v1436, %v1437
        %v1439 = vmax.f32 %v541, %v553
        %v1440 = vmax.f32 %v547, %v559
        %v1441 = vmax.f32 %v1439, %v1440
        %v1442 = vrot.slane %v1441, 4
        %v1443 = vmax.f32 %v1441, %v1442
        %v1444 = vrot.slane %v1443, 2
        %v1445 = vmax.f32 %v1443, %v1444
        %v1446 = vrot.slane %v1445, 1
        %v1447 = vmax.f32 %v1445, %v1446
        %v1448 = vsub.f32 %v539, %v1438
        %v1449 = vsub.f32 %v541, %v1447
        %v1450 = vsub.f32 %v545, %v1438
        %v1451 = vsub.f32 %v547, %v1447
        %v1452 = vsub.f32 %v551, %v1438
        %v1453 = vsub.f32 %v553, %v1447
        %v1454 = vsub.f32 %v557, %v1438
        %v1455 = vsub.f32 %v559, %v1447
        %v1456 = vmul.f32 %v1448, 1.442695
        %v1457 = vpow.pop %v1456
        %v1458 = vmul.f32 %v1449, 1.442695
        %v1459 = vpow.pop %v1458
        %v1460 = vmul.f32 %v1450, 1.442695
        %v1461 = vpow.pop %v1460
        %v1462 = vmul.f32 %v1451, 1.442695
        %v1463 = vpow.pop %v1462
        %v1464 = vmul.f32 %v1452, 1.442695
        %v1465 = vpow.pop %v1464
        %v1466 = vmul.f32 %v1453, 1.442695
        %v1467 = vpow.pop %v1466
        %v1468 = vmul.f32 %v1454, 1.442695
        %v1469 = vpow.pop %v1468
        %v1470 = vmul.f32 %v1455, 1.442695
        %v1471 = vpow.pop %v1470
        %v1472 = vadd.f32 %v1457, %v1461
        %v1473 = vadd.f32 %v1472, %v1465
        %v1474 = vadd.f32 %v1473, %v1469
        %v1475 = vrot.slane %v1474, 4
        %v1476 = vadd.f32 %v1474, %v1475
        %v1477 = vrot.slane %v1476, 2
        %v1478 = vadd.f32 %v1476, %v1477
        %v1479 = vrot.slane %v1478, 1
        %v1480 = vadd.f32 %v1478, %v1479
        %v1481 = vadd.f32 %v1459, %v1463
        %v1482 = vadd.f32 %v1481, %v1467
        %v1483 = vadd.f32 %v1482, %v1471
        %v1484 = vrot.slane %v1483, 4
        %v1485 = vadd.f32 %v1483, %v1484
        %v1486 = vrot.slane %v1485, 2
        %v1487 = vadd.f32 %v1485, %v1486
        %v1488 = vrot.slane %v1487, 1
        %v1489 = vadd.f32 %v1487, %v1488
        %v1490 = vrcp.pop %v1480
        %v1491 = vmul.f32 0.17677669, %v1490
        %v1492 = vrcp.pop %v1489
        %v1493 = vmul.f32 0.17677669, %v1492
        %v1494 = vmul.f32 %v1457, %v1491
        %v1495 = vmul.f32 %v1459, %v1493
        %v1496 = vmul.f32 %v1461, %v1491
        %v1497 = vmul.f32 %v1463, %v1493
        %v1498 = vmul.f32 %v1465, %v1491
        %v1499 = vmul.f32 %v1467, %v1493
        %v1500 = vmul.f32 %v1469, %v1491
        %v1501 = vmul.f32 %v1471, %v1493
        %v1502 = vmax.f32 %v635, %v637
        %1503 = vmax.xlane.f32.xlu0 %v1502
        %v1504 = vpop.xlane.xlu0 %1503
        %v1505 = vmax.f32 %v641, %v643
        %1506 = vmax.xlane.f32.xlu0 %v1505
        %v1507 = vpop.xlane.xlu0 %1506
        %v1508 = vmax.f32 %v647, %v649
        %1509 = vmax.xlane.f32.xlu0 %v1508
        %v1510 = vpop.xlane.xlu0 %1509
        %v1511 = vmax.f32 %v653, %v655
        %1512 = vmax.xlane.f32.xlu0 %v1511
        %v1513 = vpop.xlane.xlu0 %1512
        %v1514 = vsub.f32 %v635, %v1504
        %v1515 = vsub.f32 %v637, %v1504
        %v1516 = vsub.f32 %v641, %v1507
        %v1517 = vsub.f32 %v643, %v1507
        %v1518 = vsub.f32 %v647, %v1510
        %v1519 = vsub.f32 %v649, %v1510
        %v1520 = vsub.f32 %v653, %v1513
        %v1521 = vsub.f32 %v655, %v1513
        %v1522 = vmul.f32 %v1514, 1.442695
        %v1523 = vpow.pop %v1522
        %v1524 = vmul.f32 %v1515, 1.442695
        %v1525 = vpow.pop %v1524
        %v1526 = vmul.f32 %v1516, 1.442695
        %v1527 = vpow.pop %v1526
        %v1528 = vmul.f32 %v1517, 1.442695
        %v1529 = vpow.pop %v1528
        %v1530 = vmul.f32 %v1518, 1.442695
        %v1531 = vpow.pop %v1530
        %v1532 = vmul.f32 %v1519, 1.442695
        %v1533 = vpow.pop %v1532
        %v1534 = vmul.f32 %v1520, 1.442695
        %v1535 = vpow.pop %v1534
        %v1536 = vmul.f32 %v1521, 1.442695
        %v1537 = vpow.pop %v1536
        %v1538 = vadd.f32 %v1523, %v1525
        %1539 = vadd.xlane.f32.xlu0 %v1538
        %v1540 = vpop.xlane.xlu0 %1539
        %v1541 = vadd.f32 %v1527, %v1529
        %1542 = vadd.xlane.f32.xlu0 %v1541
        %v1543 = vpop.xlane.xlu0 %1542
        %v1544 = vadd.f32 %v1531, %v1533
        %1545 = vadd.xlane.f32.xlu0 %v1544
        %v1546 = vpop.xlane.xlu0 %1545
        %v1547 = vadd.f32 %v1535, %v1537
        %1548 = vadd.xlane.f32.xlu0 %v1547
        %v1549 = vpop.xlane.xlu0 %1548
        %v1550 = vrcp.pop %v1540
        %v1551 = vmul.f32 %v1523, %v1550
        %v1552 = vmul.f32 %v1525, %v1550
        %v1553 = vrcp.pop %v1543
        %v1554 = vmul.f32 %v1527, %v1553
        %v1555 = vmul.f32 %v1529, %v1553
        %v1556 = vrcp.pop %v1546
        %v1557 = vmul.f32 %v1531, %v1556
        %v1558 = vmul.f32 %v1533, %v1556
        %v1559 = vrcp.pop %v1549
        %v1560 = vmul.f32 %v1535, %v1559
        %v1561 = vmul.f32 %v1537, %v1559
        %v1562 = vmul.f32 %v731, 0.00390625
        %v1563 = vmul.f32 %v733, 0.00390625
        %v1564 = vmul.f32 %v737, 0.00390625
        %v1565 = vmul.f32 %v739, 0.00390625
        %v1566 = vmul.f32 %v743, 0.00390625
        %v1567 = vmul.f32 %v745, 0.00390625
        %v1568 = vmul.f32 %v749, 0.00390625
        %v1569 = vmul.f32 %v751, 0.00390625
        %1570 = vmatprep.subr.mxu0 %v1552
        %1571 = vmatpush1.xpose.msra.mxu0 %v1551
        %1572 = vmatprep.subr.mxu0 %v1555
        %1573 = vmatpush1.xpose.msra.mxu0 %v1554
        %1574 = vmatprep.subr.mxu0 %v1558
        %1575 = vmatpush1.xpose.msra.mxu0 %v1557
        %1576 = vmatprep.subr.mxu0 %v1561
        %1577 = vmatpush1.xpose.msra.mxu0 %v1560
        %1578 = vmatprep.subr.mxu0 0.0
        %1579 = vmatpush1.xpose.msra.mxu0 0.0
        %1580 = vmatprep.subr.mxu0 0.0
        %1581 = vmatpush1.xpose.msra.mxu0 0.0
        %1582 = vmatprep.subr.mxu0 0.0
        %1583 = vmatpush1.xpose.msra.mxu0 0.0
        %1584 = vmatprep.subr.mxu0 0.0
        %1585 = vmatpush1.xpose.msra.mxu0 0.0
        %1586 = vmatprep.subr.mxu0 0.0
        %1587 = vmatpush1.xpose.msra.mxu0 0.0
        %1588 = vmatprep.subr.mxu0 0.0
        %1589 = vmatpush1.xpose.msra.mxu0 0.0
        %1590 = vmatprep.subr.mxu0 0.0
        %1591 = vmatpush1.xpose.msra.mxu0 0.0
        %1592 = vmatprep.subr.mxu0 0.0
        %1593 = vmatpush1.xpose.msra.mxu0 0.0
        %1594 = vmatprep.subr.mxu0 0.0
        %1595 = vmatpush1.xpose.msra.mxu0 0.0
        %1596 = vmatprep.subr.mxu0 0.0
        %1597 = vmatpush1.xpose.msra.mxu0 0.0
        %1598 = vmatprep.subr.mxu0 0.0
        %1599 = vmatpush1.xpose.msra.mxu0 0.0
        %1600 = vmatprep.subr.mxu0 0.0
        %1601 = vmatpush1.xpose.msra.mxu0 0.0
        %1602 = vmatprep.subr.mxu0 0.0
        %1603 = vmatpush1.xpose.msra.mxu0 0.0
        %1604 = vmatprep.subr.mxu0 0.0
        %1605 = vmatpush1.xpose.msra.mxu0 0.0
        %1606 = vmatprep.subr.mxu0 0.0
        %1607 = vmatpush1.xpose.msra.mxu0 0.0
        %1608 = vmatprep.subr.mxu0 0.0
        %1609 = vmatpush1.xpose.msra.mxu0 0.0
        %1610 = vmatprep.subr.mxu0 0.0
        %1611 = vmatpush1.xpose.msra.mxu0 0.0
        %1612 = vmatprep.subr.mxu0 0.0
        %1613 = vmatpush1.xpose.msra.mxu0 0.0
        %1614 = vmatprep.subr.mxu0 0.0
        %1615 = vmatpush1.xpose.msra.mxu0 0.0
        %1616 = vmatprep.subr.mxu0 0.0
        %1617 = vmatpush1.xpose.msra.mxu0 0.0
        %1618 = vmatprep.subr.mxu0 0.0
        %1619 = vmatpush1.xpose.msra.mxu0 0.0
        %1620 = vmatprep.subr.mxu0 0.0
        %1621 = vmatpush1.xpose.msra.mxu0 0.0
        %1622 = vmatprep.subr.mxu0 0.0
        %1623 = vmatpush1.xpose.msra.mxu0 0.0
        %1624 = vmatprep.subr.mxu0 0.0
        %1625 = vmatpush1.xpose.msra.mxu0 0.0
        %1626 = vmatprep.subr.mxu0 0.0
        %1627 = vmatpush1.xpose.msra.mxu0 0.0
        %1628 = vmatprep.subr.mxu0 0.0
        %1629 = vmatpush1.xpose.msra.mxu0 0.0
        %1630 = vmatprep.subr.mxu0 0.0
        %1631 = vmatpush1.xpose.msra.mxu0 0.0
        %1632 = vmatprep.subr.mxu0 0.0
        %1633 = vmatpush1.xpose.msra.mxu0 0.0
        %1634 = vmatprep.mubr.f32.mxu0 %v1563
        %1635 = vmatmul.mubr.f32.gmra.mrb[0].mxu0 %v1562
        %v1636 = vpop.f32.mrb[0].mxu0
        %v1637 = vadd.f32 0.0, %v1636
        %v1638 = vpop.f32.mrb[0].mxu0
        %1639 = vmatprep.mubr.f32.mxu0 %v1565
        %1640 = vmatmul.mubr.f32.gmra.mrb[0].mxu0 %v1564
        %v1641 = vpop.f32.mrb[0].mxu0
        %v1642 = vadd.f32 0.0, %v1641
        %v1643 = vpop.f32.mrb[0].mxu0
        %1644 = vmatprep.mubr.f32.mxu0 %v1567
        %1645 = vmatmul.mubr.f32.gmra.mrb[0].mxu0 %v1566
        %v1646 = vpop.f32.mrb[0].mxu0
        %v1647 = vadd.f32 0.0, %v1646
        %v1648 = vpop.f32.mrb[0].mxu0
        %1649 = vmatprep.mubr.f32.mxu0 %v1569
        %1650 = vmatmul.mubr.f32.gmra.mrb[0].mxu0 %v1568
        %v1651 = vpop.f32.mrb[0].mxu0
        %v1652 = vadd.f32 0.0, %v1651
        %v1653 = vpop.f32.mrb[0].mxu0
        %1654 = vdwg.mxu0
        %v1656 = vsel %vm1002, %v1637, 0
        %v1659 = vsel %vm1002, %v1642, 0
        %v1662 = vsel %vm1002, %v1647, 0
        %v1665 = vsel %vm1002, %v1652, 0
        %1667 = vmatprep.subr.mxu0 %v1495
        %1668 = vmatpush1.msra.mxu0 %v1494
        %1669 = vmatprep.subr.mxu0 %v1497
        %1670 = vmatpush1.msra.mxu0 %v1496
        %1671 = vmatprep.subr.mxu0 %v1499
        %1672 = vmatpush1.msra.mxu0 %v1498
        %1673 = vmatprep.subr.mxu0 %v1501
        %1674 = vmatpush1.msra.mxu0 %v1500
        %1675 = vmatprep.subr.mxu0 0.0
        %1676 = vmatpush1.msra.mxu0 0.0
        %1677 = vmatprep.subr.mxu0 0.0
        %1678 = vmatpush1.msra.mxu0 0.0
        %1679 = vmatprep.subr.mxu0 0.0
        %1680 = vmatpush1.msra.mxu0 0.0
        %1681 = vmatprep.subr.mxu0 0.0
        %1682 = vmatpush1.msra.mxu0 0.0
        %1683 = vmatprep.subr.mxu0 0.0
        %1684 = vmatpush1.msra.mxu0 0.0
        %1685 = vmatprep.subr.mxu0 0.0
        %1686 = vmatpush1.msra.mxu0 0.0
        %1687 = vmatprep.subr.mxu0 0.0
        %1688 = vmatpush1.msra.mxu0 0.0
        %1689 = vmatprep.subr.mxu0 0.0
        %1690 = vmatpush1.msra.mxu0 0.0
        %1691 = vmatprep.subr.mxu0 0.0
        %1692 = vmatpush1.msra.mxu0 0.0
        %1693 = vmatprep.subr.mxu0 0.0
        %1694 = vmatpush1.msra.mxu0 0.0
        %1695 = vmatprep.subr.mxu0 0.0
        %1696 = vmatpush1.msra.mxu0 0.0
        %1697 = vmatprep.subr.mxu0 0.0
        %1698 = vmatpush1.msra.mxu0 0.0
        %1699 = vmatprep.subr.mxu0 0.0
        %1700 = vmatpush1.msra.mxu0 0.0
        %1701 = vmatprep.subr.mxu0 0.0
        %1702 = vmatpush1.msra.mxu0 0.0
        %1703 = vmatprep.subr.mxu0 0.0
        %1704 = vmatpush1.msra.mxu0 0.0
        %1705 = vmatprep.subr.mxu0 0.0
        %1706 = vmatpush1.msra.mxu0 0.0
        %1707 = vmatprep.subr.mxu0 0.0
        %1708 = vmatpush1.msra.mxu0 0.0
        %1709 = vmatprep.subr.mxu0 0.0
        %1710 = vmatpush1.msra.mxu0 0.0
        %1711 = vmatprep.subr.mxu0 0.0
        %1712 = vmatpush1.msra.mxu0 0.0
        %1713 = vmatprep.subr.mxu0 0.0
        %1714 = vmatpush1.msra.mxu0 0.0
        %1715 = vmatprep.subr.mxu0 0.0
        %1716 = vmatpush1.msra.mxu0 0.0
        %1717 = vmatprep.subr.mxu0 0.0
        %1718 = vmatpush1.msra.mxu0 0.0
        %1719 = vmatprep.subr.mxu0 0.0
        %1720 = vmatpush1.msra.mxu0 0.0
        %1721 = vmatprep.subr.mxu0 0.0
        %1722 = vmatpush1.msra.mxu0 0.0
        %1723 = vmatprep.subr.mxu0 0.0
        %1724 = vmatpush1.msra.mxu0 0.0
        %1725 = vmatprep.subr.mxu0 0.0
        %1726 = vmatpush1.msra.mxu0 0.0
        %1727 = vmatprep.subr.mxu0 0.0
        %1728 = vmatpush1.msra.mxu0 0.0
        %1729 = vmatprep.subr.mxu0 0.0
        %1730 = vmatpush1.msra.mxu0 0.0
        %1731 = vmatprep.mubr.f32.mxu0 0.0
        %1732 = vmatmul.mubr.f32.gmra.mrb[0].mxu0 %v1656
        %v1733 = vpop.f32.mrb[0].mxu0
        %v1734 = vadd.f32 0.0, %v1733
        %v1735 = vpop.f32.mrb[0].mxu0
        %v1736 = vadd.f32 0.0, %v1735
        %1737 = vmatprep.mubr.f32.mxu0 0.0
        %1738 = vmatmul.mubr.f32.gmra.mrb[0].mxu0 %v1659
        %v1739 = vpop.f32.mrb[0].mxu0
        %v1740 = vadd.f32 0.0, %v1739
        %v1741 = vpop.f32.mrb[0].mxu0
        %v1742 = vadd.f32 0.0, %v1741
        %1743 = vmatprep.mubr.f32.mxu0 0.0
        %1744 = vmatmul.mubr.f32.gmra.mrb[0].mxu0 %v1662
        %v1745 = vpop.f32.mrb[0].mxu0
        %v1746 = vadd.f32 0.0, %v1745
        %v1747 = vpop.f32.mrb[0].mxu0
        %v1748 = vadd.f32 0.0, %v1747
        %1749 = vmatprep.mubr.f32.mxu0 0.0
        %1750 = vmatmul.mubr.f32.gmra.mrb[0].mxu0 %v1665
        %v1751 = vpop.f32.mrb[0].mxu0
        %v1752 = vadd.f32 0.0, %v1751
        %v1753 = vpop.f32.mrb[0].mxu0
        %v1754 = vadd.f32 0.0, %v1753
        %1755 = vdwg.mxu0
        %v1756 = vmax.f32 %v563, %v575
        %v1757 = vmax.f32 %v569, %v581
        %v1758 = vmax.f32 %v1756, %v1757
        %v1759 = vrot.slane %v1758, 4
        %v1760 = vmax.f32 %v1758, %v1759
        %v1761 = vrot.slane %v1760, 2
        %v1762 = vmax.f32 %v1760, %v1761
        %v1763 = vrot.slane %v1762, 1
        %v1764 = vmax.f32 %v1762, %v1763
        %v1765 = vmax.f32 %v565, %v577
        %v1766 = vmax.f32 %v571, %v583
        %v1767 = vmax.f32 %v1765, %v1766
        %v1768 = vrot.slane %v1767, 4
        %v1769 = vmax.f32 %v1767, %v1768
        %v1770 = vrot.slane %v1769, 2
        %v1771 = vmax.f32 %v1769, %v1770
        %v1772 = vrot.slane %v1771, 1
        %v1773 = vmax.f32 %v1771, %v1772
        %v1774 = vsub.f32 %v563, %v1764
        %v1775 = vsub.f32 %v565, %v1773
        %v1776 = vsub.f32 %v569, %v1764
        %v1777 = vsub.f32 %v571, %v1773
        %v1778 = vsub.f32 %v575, %v1764
        %v1779 = vsub.f32 %v577, %v1773
        %v1780 = vsub.f32 %v581, %v1764
        %v1781 = vsub.f32 %v583, %v1773
        %v1782 = vmul.f32 %v1774, 1.442695
        %v1783 = vpow.pop %v1782
        %v1784 = vmul.f32 %v1775, 1.442695
        %v1785 = vpow.pop %v1784
        %v1786 = vmul.f32 %v1776, 1.442695
        %v1787 = vpow.pop %v1786
        %v1788 = vmul.f32 %v1777, 1.442695
        %v1789 = vpow.pop %v1788
        %v1790 = vmul.f32 %v1778, 1.442695
        %v1791 = vpow.pop %v1790
        %v1792 = vmul.f32 %v1779, 1.442695
        %v1793 = vpow.pop %v1792
        %v1794 = vmul.f32 %v1780, 1.442695
        %v1795 = vpow.pop %v1794
        %v1796 = vmul.f32 %v1781, 1.442695
        %v1797 = vpow.pop %v1796
        %v1798 = vadd.f32 %v1783, %v1787
        %v1799 = vadd.f32 %v1798, %v1791
        %v1800 = vadd.f32 %v1799, %v1795
        %v1801 = vrot.slane %v1800, 4
        %v1802 = vadd.f32 %v1800, %v1801
        %v1803 = vrot.slane %v1802, 2
        %v1804 = vadd.f32 %v1802, %v1803
        %v1805 = vrot.slane %v1804, 1
        %v1806 = vadd.f32 %v1804, %v1805
        %v1807 = vadd.f32 %v1785, %v1789
        %v1808 = vadd.f32 %v1807, %v1793
        %v1809 = vadd.f32 %v1808, %v1797
        %v1810 = vrot.slane %v1809, 4
        %v1811 = vadd.f32 %v1809, %v1810
        %v1812 = vrot.slane %v1811, 2
        %v1813 = vadd.f32 %v1811, %v1812
        %v1814 = vrot.slane %v1813, 1
        %v1815 = vadd.f32 %v1813, %v1814
        %v1816 = vrcp.pop %v1806
        %v1817 = vmul.f32 0.17677669, %v1816
        %v1818 = vrcp.pop %v1815
        %v1819 = vmul.f32 0.17677669, %v1818
        %v1820 = vmul.f32 %v1783, %v1817
        %v1821 = vmul.f32 %v1785, %v1819
        %v1822 = vmul.f32 %v1787, %v1817
        %v1823 = vmul.f32 %v1789, %v1819
        %v1824 = vmul.f32 %v1791, %v1817
        %v1825 = vmul.f32 %v1793, %v1819
        %v1826 = vmul.f32 %v1795, %v1817
        %v1827 = vmul.f32 %v1797, %v1819
        %v1828 = vmax.f32 %v659, %v661
        %1829 = vmax.xlane.f32.xlu0 %v1828
        %v1830 = vpop.xlane.xlu0 %1829
        %v1831 = vmax.f32 %v665, %v667
        %1832 = vmax.xlane.f32.xlu0 %v1831
        %v1833 = vpop.xlane.xlu0 %1832
        %v1834 = vmax.f32 %v671, %v673
        %1835 = vmax.xlane.f32.xlu0 %v1834
        %v1836 = vpop.xlane.xlu0 %1835
        %v1837 = vmax.f32 %v677, %v679
        %1838 = vmax.xlane.f32.xlu0 %v1837
        %v1839 = vpop.xlane.xlu0 %1838
        %v1840 = vsub.f32 %v659, %v1830
        %v1841 = vsub.f32 %v661, %v1830
        %v1842 = vsub.f32 %v665, %v1833
        %v1843 = vsub.f32 %v667, %v1833
        %v1844 = vsub.f32 %v671, %v1836
        %v1845 = vsub.f32 %v673, %v1836
        %v1846 = vsub.f32 %v677, %v1839
        %v1847 = vsub.f32 %v679, %v1839
        %v1848 = vmul.f32 %v1840, 1.442695
        %v1849 = vpow.pop %v1848
        %v1850 = vmul.f32 %v1841, 1.442695
        %v1851 = vpow.pop %v1850
        %v1852 = vmul.f32 %v1842, 1.442695
        %v1853 = vpow.pop %v1852
        %v1854 = vmul.f32 %v1843, 1.442695
        %v1855 = vpow.pop %v1854
        %v1856 = vmul.f32 %v1844, 1.442695
        %v1857 = vpow.pop %v1856
        %v1858 = vmul.f32 %v1845, 1.442695
        %v1859 = vpow.pop %v1858
        %v1860 = vmul.f32 %v1846, 1.442695
        %v1861 = vpow.pop %v1860
        %v1862 = vmul.f32 %v1847, 1.442695
        %v1863 = vpow.pop %v1862
        %v1864 = vadd.f32 %v1849, %v1851
        %1865 = vadd.xlane.f32.xlu0 %v1864
        %v1866 = vpop.xlane.xlu0 %1865
        %v1867 = vadd.f32 %v1853, %v1855
        %1868 = vadd.xlane.f32.xlu0 %v1867
        %v1869 = vpop.xlane.xlu0 %1868
        %v1870 = vadd.f32 %v1857, %v1859
        %1871 = vadd.xlane.f32.xlu0 %v1870
        %v1872 = vpop.xlane.xlu0 %1871
        %v1873 = vadd.f32 %v1861, %v1863
        %1874 = vadd.xlane.f32.xlu0 %v1873
        %v1875 = vpop.xlane.xlu0 %1874
        %v1876 = vrcp.pop %v1866
        %v1877 = vmul.f32 %v1849, %v1876
        %v1878 = vmul.f32 %v1851, %v1876
        %v1879 = vrcp.pop %v1869
        %v1880 = vmul.f32 %v1853, %v1879
        %v1881 = vmul.f32 %v1855, %v1879
        %v1882 = vrcp.pop %v1872
        %v1883 = vmul.f32 %v1857, %v1882
        %v1884 = vmul.f32 %v1859, %v1882
        %v1885 = vrcp.pop %v1875
        %v1886 = vmul.f32 %v1861, %v1885
        %v1887 = vmul.f32 %v1863, %v1885
        %v1888 = vmul.f32 %v755, 0.00390625
        %v1889 = vmul.f32 %v757, 0.00390625
        %v1890 = vmul.f32 %v761, 0.00390625
        %v1891 = vmul.f32 %v763, 0.00390625
        %v1892 = vmul.f32 %v767, 0.00390625
        %v1893 = vmul.f32 %v769, 0.00390625
        %v1894 = vmul.f32 %v773, 0.00390625
        %v1895 = vmul.f32 %v775, 0.00390625
        %1896 = vmatprep.subr.mxu0 %v1878
        %1897 = vmatpush1.xpose.msra.mxu0 %v1877
        %1898 = vmatprep.subr.mxu0 %v1881
        %1899 = vmatpush1.xpose.msra.mxu0 %v1880
        %1900 = vmatprep.subr.mxu0 %v1884
        %1901 = vmatpush1.xpose.msra.mxu0 %v1883
        %1902 = vmatprep.subr.mxu0 %v1887
        %1903 = vmatpush1.xpose.msra.mxu0 %v1886
        %1904 = vmatprep.subr.mxu0 0.0
        %1905 = vmatpush1.xpose.msra.mxu0 0.0
        %1906 = vmatprep.subr.mxu0 0.0
        %1907 = vmatpush1.xpose.msra.mxu0 0.0
        %1908 = vmatprep.subr.mxu0 0.0
        %1909 = vmatpush1.xpose.msra.mxu0 0.0
        %1910 = vmatprep.subr.mxu0 0.0
        %1911 = vmatpush1.xpose.msra.mxu0 0.0
        %1912 = vmatprep.subr.mxu0 0.0
        %1913 = vmatpush1.xpose.msra.mxu0 0.0
        %1914 = vmatprep.subr.mxu0 0.0
        %1915 = vmatpush1.xpose.msra.mxu0 0.0
        %1916 = vmatprep.subr.mxu0 0.0
        %1917 = vmatpush1.xpose.msra.mxu0 0.0
        %1918 = vmatprep.subr.mxu0 0.0
        %1919 = vmatpush1.xpose.msra.mxu0 0.0
        %1920 = vmatprep.subr.mxu0 0.0
        %1921 = vmatpush1.xpose.msra.mxu0 0.0
        %1922 = vmatprep.subr.mxu0 0.0
        %1923 = vmatpush1.xpose.msra.mxu0 0.0
        %1924 = vmatprep.subr.mxu0 0.0
        %1925 = vmatpush1.xpose.msra.mxu0 0.0
        %1926 = vmatprep.subr.mxu0 0.0
        %1927 = vmatpush1.xpose.msra.mxu0 0.0
        %1928 = vmatprep.subr.mxu0 0.0
        %1929 = vmatpush1.xpose.msra.mxu0 0.0
        %1930 = vmatprep.subr.mxu0 0.0
        %1931 = vmatpush1.xpose.msra.mxu0 0.0
        %1932 = vmatprep.subr.mxu0 0.0
        %1933 = vmatpush1.xpose.msra.mxu0 0.0
        %1934 = vmatprep.subr.mxu0 0.0
        %1935 = vmatpush1.xpose.msra.mxu0 0.0
        %1936 = vmatprep.subr.mxu0 0.0
        %1937 = vmatpush1.xpose.msra.mxu0 0.0
        %1938 = vmatprep.subr.mxu0 0.0
        %1939 = vmatpush1.xpose.msra.mxu0 0.0
        %1940 = vmatprep.subr.mxu0 0.0
        %1941 = vmatpush1.xpose.msra.mxu0 0.0
        %1942 = vmatprep.subr.mxu0 0.0
        %1943 = vmatpush1.xpose.msra.mxu0 0.0
        %1944 = vmatprep.subr.mxu0 0.0
        %1945 = vmatpush1.xpose.msra.mxu0 0.0
        %1946 = vmatprep.subr.mxu0 0.0
        %1947 = vmatpush1.xpose.msra.mxu0 0.0
        %1948 = vmatprep.subr.mxu0 0.0
        %1949 = vmatpush1.xpose.msra.mxu0 0.0
        %1950 = vmatprep.subr.mxu0 0.0
        %1951 = vmatpush1.xpose.msra.mxu0 0.0
        %1952 = vmatprep.subr.mxu0 0.0
        %1953 = vmatpush1.xpose.msra.mxu0 0.0
        %1954 = vmatprep.subr.mxu0 0.0
        %1955 = vmatpush1.xpose.msra.mxu0 0.0
        %1956 = vmatprep.subr.mxu0 0.0
        %1957 = vmatpush1.xpose.msra.mxu0 0.0
        %1958 = vmatprep.subr.mxu0 0.0
        %1959 = vmatpush1.xpose.msra.mxu0 0.0
        %1960 = vmatprep.mubr.f32.mxu0 %v1889
        %1961 = vmatmul.mubr.f32.gmra.mrb[0].mxu0 %v1888
        %v1962 = vpop.f32.mrb[0].mxu0
        %v1963 = vadd.f32 0.0, %v1962
        %v1964 = vpop.f32.mrb[0].mxu0
        %1965 = vmatprep.mubr.f32.mxu0 %v1891
        %1966 = vmatmul.mubr.f32.gmra.mrb[0].mxu0 %v1890
        %v1967 = vpop.f32.mrb[0].mxu0
        %v1968 = vadd.f32 0.0, %v1967
        %v1969 = vpop.f32.mrb[0].mxu0
        %1970 = vmatprep.mubr.f32.mxu0 %v1893
        %1971 = vmatmul.mubr.f32.gmra.mrb[0].mxu0 %v1892
        %v1972 = vpop.f32.mrb[0].mxu0
        %v1973 = vadd.f32 0.0, %v1972
        %v1974 = vpop.f32.mrb[0].mxu0
        %1975 = vmatprep.mubr.f32.mxu0 %v1895
        %1976 = vmatmul.mubr.f32.gmra.mrb[0].mxu0 %v1894
        %v1977 = vpop.f32.mrb[0].mxu0
        %v1978 = vadd.f32 0.0, %v1977
        %v1979 = vpop.f32.mrb[0].mxu0
        %1980 = vdwg.mxu0
        %v1982 = vsel %vm1002, %v1963, 0
        %v1985 = vsel %vm1002, %v1968, 0
        %v1988 = vsel %vm1002, %v1973, 0
        %v1991 = vsel %vm1002, %v1978, 0
        %1993 = vmatprep.subr.mxu0 %v1821
        %1994 = vmatpush1.msra.mxu0 %v1820
        %1995 = vmatprep.subr.mxu0 %v1823
        %1996 = vmatpush1.msra.mxu0 %v1822
        %1997 = vmatprep.subr.mxu0 %v1825
        %1998 = vmatpush1.msra.mxu0 %v1824
        %1999 = vmatprep.subr.mxu0 %v1827
        %2000 = vmatpush1.msra.mxu0 %v1826
        %2001 = vmatprep.subr.mxu0 0.0
        %2002 = vmatpush1.msra.mxu0 0.0
        %2003 = vmatprep.subr.mxu0 0.0
        %2004 = vmatpush1.msra.mxu0 0.0
        %2005 = vmatprep.subr.mxu0 0.0
        %2006 = vmatpush1.msra.mxu0 0.0
        %2007 = vmatprep.subr.mxu0 0.0
        %2008 = vmatpush1.msra.mxu0 0.0
        %2009 = vmatprep.subr.mxu0 0.0
        %2010 = vmatpush1.msra.mxu0 0.0
        %2011 = vmatprep.subr.mxu0 0.0
        %2012 = vmatpush1.msra.mxu0 0.0
        %2013 = vmatprep.subr.mxu0 0.0
        %2014 = vmatpush1.msra.mxu0 0.0
        %2015 = vmatprep.subr.mxu0 0.0
        %2016 = vmatpush1.msra.mxu0 0.0
        %2017 = vmatprep.subr.mxu0 0.0
        %2018 = vmatpush1.msra.mxu0 0.0
        %2019 = vmatprep.subr.mxu0 0.0
        %2020 = vmatpush1.msra.mxu0 0.0
        %2021 = vmatprep.subr.mxu0 0.0
        %2022 = vmatpush1.msra.mxu0 0.0
        %2023 = vmatprep.subr.mxu0 0.0
        %2024 = vmatpush1.msra.mxu0 0.0
        %2025 = vmatprep.subr.mxu0 0.0
        %2026 = vmatpush1.msra.mxu0 0.0
        %2027 = vmatprep.subr.mxu0 0.0
        %2028 = vmatpush1.msra.mxu0 0.0
        %2029 = vmatprep.subr.mxu0 0.0
        %2030 = vmatpush1.msra.mxu0 0.0
        %2031 = vmatprep.subr.mxu0 0.0
        %2032 = vmatpush1.msra.mxu0 0.0
        %2033 = vmatprep.subr.mxu0 0.0
        %2034 = vmatpush1.msra.mxu0 0.0
        %2035 = vmatprep.subr.mxu0 0.0
        %2036 = vmatpush1.msra.mxu0 0.0
        %2037 = vmatprep.subr.mxu0 0.0
        %2038 = vmatpush1.msra.mxu0 0.0
        %2039 = vmatprep.subr.mxu0 0.0
        %2040 = vmatpush1.msra.mxu0 0.0
        %2041 = vmatprep.subr.mxu0 0.0
        %2042 = vmatpush1.msra.mxu0 0.0
        %2043 = vmatprep.subr.mxu0 0.0
        %2044 = vmatpush1.msra.mxu0 0.0
        %2045 = vmatprep.subr.mxu0 0.0
        %2046 = vmatpush1.msra.mxu0 0.0
        %2047 = vmatprep.subr.mxu0 0.0
        %2048 = vmatpush1.msra.mxu0 0.0
        %2049 = vmatprep.subr.mxu0 0.0
        %2050 = vmatpush1.msra.mxu0 0.0
        %2051 = vmatprep.subr.mxu0 0.0
        %2052 = vmatpush1.msra.mxu0 0.0
        %2053 = vmatprep.subr.mxu0 0.0
        %2054 = vmatpush1.msra.mxu0 0.0
        %2055 = vmatprep.subr.mxu0 0.0
        %2056 = vmatpush1.msra.mxu0 0.0
        %2057 = vmatprep.mubr.f32.mxu0 0.0
        %2058 = vmatmul.mubr.f32.gmra.mrb[0].mxu0 %v1982
        %v2059 = vpop.f32.mrb[0].mxu0
        %v2060 = vadd.f32 0.0, %v2059
        %v2061 = vpop.f32.mrb[0].mxu0
        %v2062 = vadd.f32 0.0, %v2061
        %2063 = vmatprep.mubr.f32.mxu0 0.0
        %2064 = vmatmul.mubr.f32.gmra.mrb[0].mxu0 %v1985
        %v2065 = vpop.f32.mrb[0].mxu0
        %v2066 = vadd.f32 0.0, %v2065
        %v2067 = vpop.f32.mrb[0].mxu0
        %v2068 = vadd.f32 0.0, %v2067
        %2069 = vmatprep.mubr.f32.mxu0 0.0
        %2070 = vmatmul.mubr.f32.gmra.mrb[0].mxu0 %v1988
        %v2071 = vpop.f32.mrb[0].mxu0
        %v2072 = vadd.f32 0.0, %v2071
        %v2073 = vpop.f32.mrb[0].mxu0
        %v2074 = vadd.f32 0.0, %v2073
        %2075 = vmatprep.mubr.f32.mxu0 0.0
        %2076 = vmatmul.mubr.f32.gmra.mrb[0].mxu0 %v1991
        %v2077 = vpop.f32.mrb[0].mxu0
        %v2078 = vadd.f32 0.0, %v2077
        %v2079 = vpop.f32.mrb[0].mxu0
        %v2080 = vadd.f32 0.0, %v2079
        %2081 = vdwg.mxu0
        %v2082 = vld [vmem:[%s2] sm:$0xf]
        %v2083 = vld [vmem:[%s3] sm:$0xf]
        %2085 = vset.pattern.permute.xlu0 0
        %2086 = vperm.xlu0 %2085, %v2083
        %v2087 = vpop.permute.xlu0 %2086
        %2089 = vmatprep.subr.mxu0 %v1084
        %2090 = vmatpush1.msra.mxu0 %v1082
        %2091 = vmatprep.subr.mxu0 %v1090
        %2092 = vmatpush1.msra.mxu0 %v1088
        %2093 = vmatprep.subr.mxu0 %v1096
        %2094 = vmatpush1.msra.mxu0 %v1094
        %2095 = vmatprep.subr.mxu0 %v1102
        %2096 = vmatpush1.msra.mxu0 %v1100
        %2097 = vmatprep.subr.mxu0 %v1410
        %2098 = vmatpush1.msra.mxu0 %v1408
        %2099 = vmatprep.subr.mxu0 %v1416
        %2100 = vmatpush1.msra.mxu0 %v1414
        %2101 = vmatprep.subr.mxu0 %v1422
        %2102 = vmatpush1.msra.mxu0 %v1420
        %2103 = vmatprep.subr.mxu0 %v1428
        %2104 = vmatpush1.msra.mxu0 %v1426
        %2105 = vmatprep.subr.mxu0 %v1736
        %2106 = vmatpush1.msra.mxu0 %v1734
        %2107 = vmatprep.subr.mxu0 %v1742
        %2108 = vmatpush1.msra.mxu0 %v1740
        %2109 = vmatprep.subr.mxu0 %v1748
        %2110 = vmatpush1.msra.mxu0 %v1746
        %2111 = vmatprep.subr.mxu0 %v1754
        %2112 = vmatpush1.msra.mxu0 %v1752
        %2113 = vmatprep.subr.mxu0 %v2062
        %2114 = vmatpush1.msra.mxu0 %v2060
        %2115 = vmatprep.subr.mxu0 %v2068
        %2116 = vmatpush1.msra.mxu0 %v2066
        %2117 = vmatprep.subr.mxu0 %v2074
        %2118 = vmatpush1.msra.mxu0 %v2072
        %2119 = vmatprep.subr.mxu0 %v2080
        %2120 = vmatpush1.msra.mxu0 %v2078
        %2121 = vmatprep.subr.mxu0 0.0
        %2122 = vmatpush1.msra.mxu0 0.0
        %2123 = vmatprep.subr.mxu0 0.0
        %2124 = vmatpush1.msra.mxu0 0.0
        %2125 = vmatprep.subr.mxu0 0.0
        %2126 = vmatpush1.msra.mxu0 0.0
        %2127 = vmatprep.subr.mxu0 0.0
        %2128 = vmatpush1.msra.mxu0 0.0
        %2129 = vmatprep.subr.mxu0 0.0
        %2130 = vmatpush1.msra.mxu0 0.0
        %2131 = vmatprep.subr.mxu0 0.0
        %2132 = vmatpush1.msra.mxu0 0.0
        %2133 = vmatprep.subr.mxu0 0.0
        %2134 = vmatpush1.msra.mxu0 0.0
        %2135 = vmatprep.subr.mxu0 0.0
        %2136 = vmatpush1.msra.mxu0 0.0
        %2137 = vmatprep.subr.mxu0 0.0
        %2138 = vmatpush1.msra.mxu0 0.0
        %2139 = vmatprep.subr.mxu0 0.0
        %2140 = vmatpush1.msra.mxu0 0.0
        %2141 = vmatprep.subr.mxu0 0.0
        %2142 = vmatpush1.msra.mxu0 0.0
        %2143 = vmatprep.subr.mxu0 0.0
        %2144 = vmatpush1.msra.mxu0 0.0
        %2145 = vmatprep.subr.mxu0 0.0
        %2146 = vmatpush1.msra.mxu0 0.0
        %2147 = vmatprep.subr.mxu0 0.0
        %2148 = vmatpush1.msra.mxu0 0.0
        %2149 = vmatprep.subr.mxu0 0.0
        %2150 = vmatpush1.msra.mxu0 0.0
        %2151 = vmatprep.subr.mxu0 0.0
        %2152 = vmatpush1.msra.mxu0 0.0
        %2153 = vmatprep.mubr.f32.mxu0 0.0
        %2154 = vmatmul.mubr.f32.gmra.mrb[0].mxu0 %v2082
        %v2155 = vpop.f32.mrb[0].mxu0
        %v2156 = vadd.f32 %v2087, %v2155
        %v2157 = vpop.f32.mrb[0].mxu0
        %v2158 = vadd.f32 %v2087, %v2157
        %2159 = vdwg.mxu0
        %v2160 = vsel %vm419, %v2156, 0.0
        %v2161 = vrot.slane %v2160, 4
        %v2162 = vadd.f32 %v2160, %v2161
        %v2163 = vrot.slane %v2162, 2
        %v2164 = vadd.f32 %v2162, %v2163
        %v2165 = vrot.slane %v2164, 1
        %v2166 = vadd.f32 %v2164, %v2165
        %v2167 = vsel %vm419, %v2158, 0.0
        %v2168 = vrot.slane %v2167, 4
        %v2169 = vadd.f32 %v2167, %v2168
        %v2170 = vrot.slane %v2169, 2
        %v2171 = vadd.f32 %v2169, %v2170
        %v2172 = vrot.slane %v2171, 1
        %v2173 = vadd.f32 %v2171, %v2172
        %v2174 = vrcp.pop 4.0
        %v2175 = vmul.f32 %v2166, %v2174
        %v2176 = vmul.f32 %v2173, %v2174
        %v2177 = vsub.f32 %v2156, %v2175
        %v2178 = vsub.f32 %v2158, %v2176
        %v2179 = vmul.f32 %v2177, %v2177
        %v2180 = vmul.f32 %v2178, %v2178
        %v2181 = vsel %vm419, %v2179, 0.0
        %v2182 = vrot.slane %v2181, 4
        %v2183 = vadd.f32 %v2181, %v2182
        %v2184 = vrot.slane %v2183, 2
        %v2185 = vadd.f32 %v2183, %v2184
        %v2186 = vrot.slane %v2185, 1
        %v2187 = vadd.f32 %v2185, %v2186
        %v2188 = vsel %vm419, %v2180, 0.0
        %v2189 = vrot.slane %v2188, 4
        %v2190 = vadd.f32 %v2188, %v2189
        %v2191 = vrot.slane %v2190, 2
        %v2192 = vadd.f32 %v2190, %v2191
        %v2193 = vrot.slane %v2192, 1
        %v2194 = vadd.f32 %v2192, %v2193
        %v2195 = vmul.f32 %v2187, %v2174
        %v2196 = vmul.f32 %v2194, %v2174
        %v2197 = vadd.f32 %v2195, 1e-05
        %v2198 = vadd.f32 %v2196, 1e-05
        %v2199 = vrsqrt.pop %v2197
        %v2200 = vrsqrt.pop %v2198
        %v2201 = vmul.f32 %v2177, %v2199
        %v2202 = vmul.f32 %v2178, %v2200
        %v2203 = vld [vmem:[%s4] sm:$0xf]
        %2205 = vset.pattern.permute.xlu0 0
        %2206 = vperm.xlu0 %2205, %v2203
        %v2207 = vpop.permute.xlu0 %2206
        %v2209 = vmul.f32 %v2201, %v2207
        %v2210 = vmul.f32 %v2202, %v2207
        %v2213 = vcombine.low %v2209, %v2210
        %2215 = vst [vmem:[%s217] sm:$0xff] %v2213
        %s2216 = sand.u32 %s137, 1
        %s2217 = scalar_lea.sflag [#allocation3], %s2216
        %s2218 = sand.u32 %s137, 1
        %s2219 = smul.addr %s2218, 8
        %s2220 = scalar_lea.vmem [#allocation2], %s2219
        // Predicated region
        $region41: #{tpu_custom_call.1} parent=39 // pred_check
          %p2221 = pneg %p147
        $region42: #{tpu_custom_call.1} parent=39 // pred_check_branch
          %2223 = sbr.rel (%p2221) target = $region44
        $region43: #{tpu_custom_call.1} parent=39 // pred_region
          %s2225 = ssub.s32 128, 128
          %2226 = vsyncadd %s2217, %s2225
          %s2227 = smul.addr %s19, 2
          %s2228 = smul.addr %s2227, 64
          %s2229 = scalar_lea.hbm %s5, %s2228
          %s2231 = sshll.u32 %s2220, 4
          %s2232 = int_to_ptr.vmem [resolvable:$true] %s2231
          %2234 = dma.vmem_to_hbm [thread:$0]  %s2232, 128, %s2229, %s2217
        $region44: #{tpu_custom_call.1} parent=39 // pred_fallthru
          _
      $region40: #{tpu_custom_call.1} parent=5 // pred_fallthru
        _
      %p2235 = scmp.le.s32.totalorder 2, %s14
      // Predicated region
      $region45: #{tpu_custom_call.1} parent=5 // pred_check
        %p2236 = pneg %p2235
      $region46: #{tpu_custom_call.1} parent=5 // pred_check_branch
        %2238 = sbr.rel (%p2236) target = $region48
      $region47: #{tpu_custom_call.1} parent=5 // pred_region
        %s2239 = ssub.s32 %s14, 2
        // Predicated region
        $region49: #{tpu_custom_call.1} parent=47 // pred_check
          %p2240 = pneg %p153
        $region50: #{tpu_custom_call.1} parent=47 // pred_check_branch
          %2242 = sbr.rel (%p2240) target = $region52
        $region51: #{tpu_custom_call.1} parent=47 // pred_region
          %s2243 = sand.u32 %s138, 1
          %s2244 = scalar_lea.sflag [#allocation3], %s2243
          %s2245 = sand.u32 %s138, 1
          %s2246 = smul.addr %s2245, 8
          %s2247 = scalar_lea.vmem [#allocation2], %s2246
          %2248 = dma.done %s2244, 128
        $region52: #{tpu_custom_call.1} parent=47 // pred_fallthru
          _
      $region48: #{tpu_custom_call.1} parent=5 // pred_fallthru
        _
    $region6: #{tpu_custom_call.1} parent=1 // loop_footer
      %s18 = sadd.s32 1, %s14
    $region7: #{tpu_custom_call.1} parent=1 // loop_footer_branch
      %13 = sbr.rel target = $region3
    $region8: #{tpu_custom_call.1} parent=1 // loop_exit
      _
    %2249 = vsyncpa [#allocation3], 1
    %s2250 = scalar_lea.sflag [#allocation3], 1
    %2251 = vsyncpa %s2250, 1

</llo_original>
